<compile_context>
chip_gen: v6e
topology: v6e:2x2x1
jax: 0.10.0
libtpu: 0.0.40
codegen_flags: <defaults>
</compile_context>

<pallas_src>
import functools
import math

import jax
import jax.numpy as jnp
from jax import lax
from jax.experimental import pallas as pl
from jax.experimental.pallas import tpu as pltpu

_LANE = 128
_NEG = -1e30
_VMEM_LIMIT = 48 * 1024 * 1024  # safe on v5e/v6e (128 MiB phys) and v7x (64 MiB phys)


def _round_up(x, m):
    return (x + m - 1) // m * m


# ---------------- kernel 1: support = x @ W1 (row-tiled over nodes) ----------------
def _support_kernel(x_ref, w1_ref, sup_ref):
    sup = jnp.dot(x_ref[...], w1_ref[...], preferred_element_type=jnp.float32)
    sup_ref[...] = sup.astype(sup_ref.dtype)


# ------- kernel 2: s2 = relu(adj_rowtile @ support + b1) @ W2 (adj streamed) -------
def _layer1_kernel(adj_ref, sup_ref, b1_ref, w2_ref, s2_ref):
    h = jnp.dot(adj_ref[...], sup_ref[...], preferred_element_type=jnp.float32)
    h = jnp.maximum(h + b1_ref[...], 0.0)
    # dropout with p=0 (module default dropout=False) -> identity
    # TODO(synk): stochastic dropout (training mode, p>0) not implemented.
    s2 = jnp.dot(h.astype(w2_ref.dtype), w2_ref[...],
                 preferred_element_type=jnp.float32)
    s2_ref[...] = s2.astype(s2_ref.dtype)


# ---------- kernel 3: out_rowtile = log_softmax(adj_rowtile @ s2 + b2) -------------
def _layer2_kernel(adj_ref, s2_ref, b2_ref, out_ref, *, nclass):
    z = jnp.dot(adj_ref[...], s2_ref[...], preferred_element_type=jnp.float32)
    z = z + b2_ref[...]
    # mask padded class columns so they don't perturb the softmax normalizer
    col = lax.broadcasted_iota(jnp.int32, z.shape, 1)
    z = jnp.where(col < nclass, z, _NEG)
    m = jnp.max(z, axis=1, keepdims=True)
    s = z - m
    lse = jnp.log(jnp.sum(jnp.exp(s), axis=1, keepdims=True))
    out_ref[...] = (s - lse).astype(out_ref.dtype)


@functools.partial(jax.jit, static_argnames=("tile_n",))
def gcn_forward(x, adj, w1, b1, w2, b2, *, tile_n=512):
    n, nfeat = x.shape
    nhid = w1.shape[1]
    nclass = w2.shape[1]
    assert adj.shape == (n, n)

    mxu_dtype = jnp.bfloat16

    f_pad = _round_up(nfeat, _LANE)
    h_pad = _round_up(nhid, _LANE)
    c_pad = _round_up(nclass, _LANE)

    tile = _round_up(min(tile_n, _round_up(n, 8)), 8)
    n_pad = _round_up(n, tile)
    n_tiles = n_pad // tile

    # zero-pad + cast (pure layout plumbing; padded rows/cols contribute exact zeros)
    xp = jnp.zeros((n_pad, f_pad), mxu_dtype).at[:n, :nfeat].set(x.astype(mxu_dtype))
    adjp = jnp.zeros((n_pad, n_pad), mxu_dtype).at[:n, :n].set(adj.astype(mxu_dtype))
    w1p = jnp.zeros((f_pad, h_pad), mxu_dtype).at[:nfeat, :nhid].set(w1.astype(mxu_dtype))
    w2p = jnp.zeros((h_pad, c_pad), mxu_dtype).at[:nhid, :nclass].set(w2.astype(mxu_dtype))
    b1p = jnp.zeros((1, h_pad), jnp.float32).at[0, :nhid].set(b1.astype(jnp.float32))
    b2p = jnp.zeros((1, c_pad), jnp.float32).at[0, :nclass].set(b2.astype(jnp.float32))

    cparams = pltpu.CompilerParams(
        dimension_semantics=("parallel",),
        vmem_limit_bytes=_VMEM_LIMIT,
    )

    # ---- phase 1: support = x @ W1 (row-tiled) ----
    support = pl.pallas_call(
        _support_kernel,
        out_shape=jax.ShapeDtypeStruct((n_pad, h_pad), mxu_dtype),
        grid=(n_tiles,),
        in_specs=[
            pl.BlockSpec((tile, f_pad), lambda i: (i, 0)),
            pl.BlockSpec((f_pad, h_pad), lambda i: (0, 0)),
        ],
        out_specs=pl.BlockSpec((tile, h_pad), lambda i: (i, 0)),
        compiler_params=cparams,
        cost_estimate=pl.CostEstimate(
            flops=2 * n_pad * f_pad * h_pad,
            transcendentals=0,
            bytes_accessed=(n_pad * f_pad + f_pad * h_pad + n_pad * h_pad) * 2,
        ),
    )(xp, w1p)

    # ---- phase 2: s2 = relu(adj @ support + b1) @ W2 (adj row slabs streamed) ----
    s2 = pl.pallas_call(
        _layer1_kernel,
        out_shape=jax.ShapeDtypeStruct((n_pad, c_pad), mxu_dtype),
        grid=(n_tiles,),
        in_specs=[
            pl.BlockSpec((tile, n_pad), lambda i: (i, 0)),   # adj row slab (streamed)
            pl.BlockSpec((n_pad, h_pad), lambda i: (0, 0)),  # support (VMEM resident)
            pl.BlockSpec((1, h_pad), lambda i: (0, 0)),      # b1
            pl.BlockSpec((h_pad, c_pad), lambda i: (0, 0)),  # W2
        ],
        out_specs=pl.BlockSpec((tile, c_pad), lambda i: (i, 0)),
        compiler_params=cparams,
        cost_estimate=pl.CostEstimate(
            flops=2 * n_pad * n_pad * h_pad + 2 * n_pad * h_pad * c_pad,
            transcendentals=0,
            bytes_accessed=(n_pad * n_pad + n_pad * h_pad
                            + h_pad * c_pad + n_pad * c_pad) * 2,
        ),
    )(adjp, support, b1p, w2p)

    # ---- phase 3: out = log_softmax(adj @ s2 + b2) (adj row slabs streamed) ----
    out_pad = pl.pallas_call(
        functools.partial(_layer2_kernel, nclass=nclass),
        out_shape=jax.ShapeDtypeStruct((n_pad, c_pad), jnp.float32),
        grid=(n_tiles,),
        in_specs=[
            pl.BlockSpec((tile, n_pad), lambda i: (i, 0)),   # adj row slab (streamed)
            pl.BlockSpec((n_pad, c_pad), lambda i: (0, 0)),  # s2 (VMEM resident)
            pl.BlockSpec((1, c_pad), lambda i: (0, 0)),      # b2
        ],
        out_specs=pl.BlockSpec((tile, c_pad), lambda i: (i, 0)),
        compiler_params=cparams,
        cost_estimate=pl.CostEstimate(
            flops=2 * n_pad * n_pad * c_pad,
            transcendentals=n_pad * c_pad,
            bytes_accessed=(n_pad * n_pad + n_pad * c_pad) * 2 + n_pad * c_pad * 4,
        ),
    )(adjp, s2, b2p)

    # TODO(synk): for very large N (when one (tile, N) adj slab no longer fits VMEM),
    # add a K-reduction grid axis over adj columns with a VMEM f32 accumulator (P3).
    return out_pad[:n, :nclass]


def init_gcn_params(key, nfeat, nhid, nclass):
    """Mirror GraphConvolution.reset_parameters: uniform(-stdv, stdv), stdv=1/sqrt(out)."""
    k1, k2, k3, k4 = jax.random.split(key, 4)
    stdv1 = 1.0 / math.sqrt(nhid)
    stdv2 = 1.0 / math.sqrt(nclass)
    w1 = jax.random.uniform(k1, (nfeat, nhid), jnp.float32, -stdv1, stdv1)
    b1 = jax.random.uniform(k2, (nhid,), jnp.float32, -stdv1, stdv1)
    w2 = jax.random.uniform(k3, (nhid, nclass), jnp.float32, -stdv2, stdv2)
    b2 = jax.random.uniform(k4, (nclass,), jnp.float32, -stdv2, stdv2)
    return w1, b1, w2, b2


if __name__ == "__main__":
    # small shapes: N=200 nodes, nfeat=64, nhid=32, nclass=2; tile_n=64 -> 4 grid steps
    N, NFEAT, NHID, NCLASS = 200, 64, 32, 2
    TILE_N = 64

    key = jax.random.PRNGKey(0)
    kx, kadj, kparam = jax.random.split(key, 3)

    x = jax.random.normal(kx, (N, NFEAT), jnp.float32)

    # symmetric, row-normalized adjacency (typical GCN preprocessing)
    a = (jax.random.uniform(kadj, (N, N)) < 0.05).astype(jnp.float32)
    a = jnp.maximum(a, a.T) + jnp.eye(N, dtype=jnp.float32)
    adj = a / jnp.sum(a, axis=1, keepdims=True)

    w1, b1, w2, b2 = init_gcn_params(kparam, NFEAT, NHID, NCLASS)

    out = gcn_forward(x, adj, w1, b1, w2, b2, tile_n=TILE_N)
    jax.block_until_ready(out)
    assert out.shape == (N, NCLASS)

    # precision-matched reference (same bf16 matmul inputs, f32 accumulation)
    bf = jnp.bfloat16
    sup_r = jnp.dot(x.astype(bf), w1.astype(bf),
                    preferred_element_type=jnp.float32).astype(bf)
    h_r = jnp.maximum(
        jnp.dot(adj.astype(bf), sup_r, preferred_element_type=jnp.float32) + b1, 0.0)
    s2_r = jnp.dot(h_r.astype(bf), w2.astype(bf),
                   preferred_element_type=jnp.float32).astype(bf)
    z_r = jnp.dot(adj.astype(bf), s2_r, preferred_element_type=jnp.float32) + b2
    ref_matched = jax.nn.log_softmax(z_r, axis=1)
    assert jnp.allclose(out, ref_matched, atol=1e-4, rtol=1e-4), \
        float(jnp.max(jnp.abs(out - ref_matched)))

    # loose check against the pure-f32 reference (bf16 matmul inputs add ~1% error)
    h_f = jnp.maximum(adj @ (x @ w1) + b1, 0.0)
    ref_f32 = jax.nn.log_softmax(adj @ (h_f @ w2) + b2, axis=1)
    assert jnp.allclose(out, ref_f32, atol=1e-1, rtol=1e-1)

    print("KERNEL_OK")
</pallas_src>

<mosaic_0001>
module attributes {stable_mosaic.version = 11 : i64} {
  func.func @_support_kernel(%arg0: i32, %arg1: memref<64x128xbf16, #tpu.memory_space<vmem>>, %arg2: memref<128x128xbf16, #tpu.memory_space<vmem>>, %arg3: memref<64x128xbf16, #tpu.memory_space<vmem>>) attributes {dimension_semantics = [#tpu.dimension_semantics<parallel>], iteration_bounds = array<i64: 4>, scalar_prefetch = 0 : i64, scratch_operands = 0 : i64, tpu.core_type = #tpu.core_type<tc>, window_params = [{transform_indices = @transform_0, window_bounds = array<i64: 64, 128>}, {pipeline_mode = #tpu.pipeline_mode<synchronous>, transform_indices = @transform_1, window_bounds = array<i64: 128, 128>}, {transform_indices = @transform_2, window_bounds = array<i64: 64, 128>}]} {
    %c0 = arith.constant 0 : index
    %c0_0 = arith.constant 0 : index
    %0 = vector.load %arg1[%c0, %c0_0] : memref<64x128xbf16, #tpu.memory_space<vmem>>, vector<64x128xbf16>
    %c0_1 = arith.constant 0 : index
    %c0_2 = arith.constant 0 : index
    %1 = vector.load %arg2[%c0_1, %c0_2] : memref<128x128xbf16, #tpu.memory_space<vmem>>, vector<128x128xbf16>
    %cst = arith.constant dense<0.000000e+00> : vector<64x128xf32>
    %2 = tpu.matmul %0, %1, %cst {dimension_numbers = #tpu.dot_dimension_numbers<[1], [0], [0], [1], [0, 0, 1, 1], [], []>} : vector<64x128xbf16>, vector<128x128xbf16>, vector<64x128xf32> -> vector<64x128xf32>
    %3 = arith.truncf %2 : vector<64x128xf32> to vector<64x128xbf16>
    %c0_3 = arith.constant 0 : index
    %c0_4 = arith.constant 0 : index
    %4 = vector.load %arg3[%c0_3, %c0_4] : memref<64x128xbf16, #tpu.memory_space<vmem>>, vector<64x128xbf16>
    tpu.vector_store %arg3[%c0_3, %c0_4], %3 {strides = array<i32>} : memref<64x128xbf16, #tpu.memory_space<vmem>>, vector<64x128xbf16>,
    return
  }
  func.func @transform_0(%arg0: i32) -> (i32, i32) {
    %c0_i32 = arith.constant 0 : i32
    %c0_i32_0 = arith.constant 0 : i32
    return %arg0, %c0_i32 : i32, i32
  }
  func.func @transform_1(%arg0: i32) -> (i32, i32) {
    %c0_i32 = arith.constant 0 : i32
    %c0_i32_0 = arith.constant 0 : i32
    %c0_i32_1 = arith.constant 0 : i32
    return %c0_i32, %c0_i32_0 : i32, i32
  }
  func.func @transform_2(%arg0: i32) -> (i32, i32) {
    %c0_i32 = arith.constant 0 : i32
    %c0_i32_0 = arith.constant 0 : i32
    return %arg0, %c0_i32 : i32, i32
  }
}

module attributes {stable_mosaic.version = 11 : i64} {
  func.func @_layer1_kernel(%arg0: i32, %arg1: memref<64x256xbf16, #tpu.memory_space<vmem>>, %arg2: memref<256x128xbf16, #tpu.memory_space<vmem>>, %arg3: memref<1x128xf32, #tpu.memory_space<vmem>>, %arg4: memref<128x128xbf16, #tpu.memory_space<vmem>>, %arg5: memref<64x128xbf16, #tpu.memory_space<vmem>>) attributes {dimension_semantics = [#tpu.dimension_semantics<parallel>], iteration_bounds = array<i64: 4>, scalar_prefetch = 0 : i64, scratch_operands = 0 : i64, tpu.core_type = #tpu.core_type<tc>, window_params = [{transform_indices = @transform_0, window_bounds = array<i64: 64, 256>}, {pipeline_mode = #tpu.pipeline_mode<synchronous>, transform_indices = @transform_1, window_bounds = array<i64: 256, 128>}, {pipeline_mode = #tpu.pipeline_mode<synchronous>, transform_indices = @transform_2, window_bounds = array<i64: 1, 128>}, {pipeline_mode = #tpu.pipeline_mode<synchronous>, transform_indices = @transform_3, window_bounds = array<i64: 128, 128>}, {transform_indices = @transform_4, window_bounds = array<i64: 64, 128>}]} {
    %c0 = arith.constant 0 : index
    %c0_0 = arith.constant 0 : index
    %0 = vector.load %arg1[%c0, %c0_0] : memref<64x256xbf16, #tpu.memory_space<vmem>>, vector<64x256xbf16>
    %c0_1 = arith.constant 0 : index
    %c0_2 = arith.constant 0 : index
    %1 = vector.load %arg2[%c0_1, %c0_2] : memref<256x128xbf16, #tpu.memory_space<vmem>>, vector<256x128xbf16>
    %cst = arith.constant dense<0.000000e+00> : vector<64x128xf32>
    %2 = tpu.matmul %0, %1, %cst {dimension_numbers = #tpu.dot_dimension_numbers<[1], [0], [0], [1], [0, 0, 1, 1], [], []>} : vector<64x256xbf16>, vector<256x128xbf16>, vector<64x128xf32> -> vector<64x128xf32>
    %c0_3 = arith.constant 0 : index
    %c0_4 = arith.constant 0 : index
    %3 = vector.load %arg3[%c0_3, %c0_4] : memref<1x128xf32, #tpu.memory_space<vmem>>, vector<1x128xf32>
    %4 = vector.broadcast %3 : vector<1x128xf32> to vector<64x128xf32>
    %5 = arith.addf %2, %4 : vector<64x128xf32>
    %cst_5 = arith.constant 0.000000e+00 : f32
    %6 = vector.broadcast %cst_5 : f32 to vector<64x128xf32>
    %7 = arith.maximumf %5, %6 : vector<64x128xf32>
    %8 = arith.truncf %7 : vector<64x128xf32> to vector<64x128xbf16>
    %c0_6 = arith.constant 0 : index
    %c0_7 = arith.constant 0 : index
    %9 = vector.load %arg4[%c0_6, %c0_7] : memref<128x128xbf16, #tpu.memory_space<vmem>>, vector<128x128xbf16>
    %cst_8 = arith.constant dense<0.000000e+00> : vector<64x128xf32>
    %10 = tpu.matmul %8, %9, %cst_8 {dimension_numbers = #tpu.dot_dimension_numbers<[1], [0], [0], [1], [0, 0, 1, 1], [], []>} : vector<64x128xbf16>, vector<128x128xbf16>, vector<64x128xf32> -> vector<64x128xf32>
    %11 = arith.truncf %10 : vector<64x128xf32> to vector<64x128xbf16>
    %c0_9 = arith.constant 0 : index
    %c0_10 = arith.constant 0 : index
    %12 = vector.load %arg5[%c0_9, %c0_10] : memref<64x128xbf16, #tpu.memory_space<vmem>>, vector<64x128xbf16>
    tpu.vector_store %arg5[%c0_9, %c0_10], %11 {strides = array<i32>} : memref<64x128xbf16, #tpu.memory_space<vmem>>, vector<64x128xbf16>,
    return
  }
  func.func @transform_0(%arg0: i32) -> (i32, i32) {
    %c0_i32 = arith.constant 0 : i32
    %c0_i32_0 = arith.constant 0 : i32
    return %arg0, %c0_i32 : i32, i32
  }
  func.func @transform_1(%arg0: i32) -> (i32, i32) {
    %c0_i32 = arith.constant 0 : i32
    %c0_i32_0 = arith.constant 0 : i32
    %c0_i32_1 = arith.constant 0 : i32
    return %c0_i32, %c0_i32_0 : i32, i32
  }
  func.func @transform_2(%arg0: i32) -> (i32, i32) {
    %c0_i32 = arith.constant 0 : i32
    %c0_i32_0 = arith.constant 0 : i32
    %c0_i32_1 = arith.constant 0 : i32
    return %c0_i32, %c0_i32_0 : i32, i32
  }
  func.func @transform_3(%arg0: i32) -> (i32, i32) {
    %c0_i32 = arith.constant 0 : i32
    %c0_i32_0 = arith.constant 0 : i32
    %c0_i32_1 = arith.constant 0 : i32
    return %c0_i32, %c0_i32_0 : i32, i32
  }
  func.func @transform_4(%arg0: i32) -> (i32, i32) {
    %c0_i32 = arith.constant 0 : i32
    %c0_i32_0 = arith.constant 0 : i32
    return %arg0, %c0_i32 : i32, i32
  }
}

module attributes {stable_mosaic.version = 11 : i64} {
  func.func @_layer2_kernel(%arg0: i32, %arg1: memref<64x256xbf16, #tpu.memory_space<vmem>>, %arg2: memref<256x128xbf16, #tpu.memory_space<vmem>>, %arg3: memref<1x128xf32, #tpu.memory_space<vmem>>, %arg4: memref<64x128xf32, #tpu.memory_space<vmem>>) attributes {dimension_semantics = [#tpu.dimension_semantics<parallel>], iteration_bounds = array<i64: 4>, scalar_prefetch = 0 : i64, scratch_operands = 0 : i64, tpu.core_type = #tpu.core_type<tc>, window_params = [{transform_indices = @transform_0, window_bounds = array<i64: 64, 256>}, {pipeline_mode = #tpu.pipeline_mode<synchronous>, transform_indices = @transform_1, window_bounds = array<i64: 256, 128>}, {pipeline_mode = #tpu.pipeline_mode<synchronous>, transform_indices = @transform_2, window_bounds = array<i64: 1, 128>}, {transform_indices = @transform_3, window_bounds = array<i64: 64, 128>}]} {
    %c0 = arith.constant 0 : index
    %c0_0 = arith.constant 0 : index
    %0 = vector.load %arg1[%c0, %c0_0] : memref<64x256xbf16, #tpu.memory_space<vmem>>, vector<64x256xbf16>
    %c0_1 = arith.constant 0 : index
    %c0_2 = arith.constant 0 : index
    %1 = vector.load %arg2[%c0_1, %c0_2] : memref<256x128xbf16, #tpu.memory_space<vmem>>, vector<256x128xbf16>
    %cst = arith.constant dense<0.000000e+00> : vector<64x128xf32>
    %2 = tpu.matmul %0, %1, %cst {dimension_numbers = #tpu.dot_dimension_numbers<[1], [0], [0], [1], [0, 0, 1, 1], [], []>} : vector<64x256xbf16>, vector<256x128xbf16>, vector<64x128xf32> -> vector<64x128xf32>
    %c0_3 = arith.constant 0 : index
    %c0_4 = arith.constant 0 : index
    %3 = vector.load %arg3[%c0_3, %c0_4] : memref<1x128xf32, #tpu.memory_space<vmem>>, vector<1x128xf32>
    %4 = vector.broadcast %3 : vector<1x128xf32> to vector<64x128xf32>
    %5 = arith.addf %2, %4 : vector<64x128xf32>
    %6 = tpu.iota {dimensions = array<i32: 1>} : vector<64x128xi32>
    %c2_i32 = arith.constant 2 : i32
    %7 = vector.broadcast %c2_i32 : i32 to vector<64x128xi32>
    %8 = arith.cmpi slt, %6, %7 : vector<64x128xi32>
    %cst_5 = arith.constant -1.000000e+30 : f32
    %9 = vector.broadcast %cst_5 : f32 to vector<64x128xf32>
    %10 = arith.select %8, %5, %9 : vector<64x128xi1>, vector<64x128xf32>
    %cst_6 = arith.constant dense<0xFF800000> : vector<64xf32>
    %11 = vector.multi_reduction <maximumf>, %10, %cst_6 [1] : vector<64x128xf32> to vector<64xf32>
    %12 = vector.shape_cast %11 : vector<64xf32> to vector<64x1xf32>
    %13 = vector.broadcast %12 : vector<64x1xf32> to vector<64x128xf32>
    %14 = arith.subf %10, %13 : vector<64x128xf32>
    %15 = math.exp %14 : vector<64x128xf32>
    %cst_7 = arith.constant dense<0.000000e+00> : vector<64xf32>
    %16 = vector.multi_reduction <add>, %15, %cst_7 [1] : vector<64x128xf32> to vector<64xf32>
    %17 = vector.shape_cast %16 : vector<64xf32> to vector<64x1xf32>
    %18 = math.log %17 : vector<64x1xf32>
    %19 = vector.broadcast %18 : vector<64x1xf32> to vector<64x128xf32>
    %20 = arith.subf %14, %19 : vector<64x128xf32>
    %c0_8 = arith.constant 0 : index
    %c0_9 = arith.constant 0 : index
    %21 = vector.load %arg4[%c0_8, %c0_9] : memref<64x128xf32, #tpu.memory_space<vmem>>, vector<64x128xf32>
    tpu.vector_store %arg4[%c0_8, %c0_9], %20 {strides = array<i32>} : memref<64x128xf32, #tpu.memory_space<vmem>>, vector<64x128xf32>,
    return
  }
  func.func @transform_0(%arg0: i32) -> (i32, i32) {
    %c0_i32 = arith.constant 0 : i32
    %c0_i32_0 = arith.constant 0 : i32
    return %arg0, %c0_i32 : i32, i32
  }
  func.func @transform_1(%arg0: i32) -> (i32, i32) {
    %c0_i32 = arith.constant 0 : i32
    %c0_i32_0 = arith.constant 0 : i32
    %c0_i32_1 = arith.constant 0 : i32
    return %c0_i32, %c0_i32_0 : i32, i32
  }
  func.func @transform_2(%arg0: i32) -> (i32, i32) {
    %c0_i32 = arith.constant 0 : i32
    %c0_i32_0 = arith.constant 0 : i32
    %c0_i32_1 = arith.constant 0 : i32
    return %c0_i32, %c0_i32_0 : i32, i32
  }
  func.func @transform_3(%arg0: i32) -> (i32, i32) {
    %c0_i32 = arith.constant 0 : i32
    %c0_i32_0 = arith.constant 0 : i32
    return %arg0, %c0_i32 : i32, i32
  }
}

</mosaic_0001>

<llo_original>
// kernel: gcn_forward.4
$region0: #{gcn_forward.4}
  #allocation0 [shape = 'u32[]', space=smem, size = 0x4, offset = 0x4, fixed_abs, tag = 'smem constant byte address 0x4 - core index']
  #allocation1 [shape = 'u32[144,128]{1,0:T(1,128)}', space=vmem, size = 0x12000, scoped, tag = 'internal scratch']
  %s0 = inlined_call_operand.vmem [shape: bf16[256,256], index: 0, kind: input, shape index: {}]
  %s1 = inlined_call_operand.vmem [shape: bf16[256,128], index: 1, kind: input, shape index: {}]
  %s2 = inlined_call_operand.vmem [shape: f32[1,128], index: 2, kind: input, shape index: {}]
  %s3 = inlined_call_operand.vmem [shape: bf16[128,128], index: 3, kind: input, shape index: {}]
  %s4 = inlined_call_operand.vmem [shape: bf16[256,128], index: 4, kind: output, shape index: {}]
  %s5 = sld [smem:[#allocation0]]
  $region49: #{gcn_forward.4} parent=0
    _
  %s7 = ssub.s32 1, %s5
  %s8 = scalar_select 0, %s7, %s5
  loop: start=0, step=1, limit=6
  $region2: #{gcn_forward.4} parent=0 // loop_pre_header
    _
  $region3: #{gcn_forward.4} parent=0 // loop_header
    %s10 = sphi 0, %s14
    %p11 = scmp.ge.s32.totalorder %s10, 6
    %s20 = sphi 0, %s22
    %s23 = sphi 0, %s20
    %s24 = sphi 0, %s23
    %s40 = sphi 0, %s24
    %s44 = sphi 0, %s44
    %s46 = sphi 0, %s44
    %s47 = sphi 0, %s46
    %s61 = sphi 0, %s47
    %s65 = sphi 0, %s65
    %s67 = sphi 0, %s65
    %s68 = sphi 0, %s67
    %s82 = sphi 0, %s68
    %s86 = sphi 0, %s86
    %s88 = sphi 0, %s86
    %s89 = sphi 0, %s88
    %s103 = sphi 0, %s89
    %s109 = sphi 0, %s111
    %s112 = sphi 0, %s109
    %s113 = sphi 0, %s112
    %s129 = sphi 0, %s113
  $region4: #{gcn_forward.4} parent=0 // loop_header_branch
    %13 = sbr.rel (%p11) target = $region8
  $region5: #{gcn_forward.4} parent=0 // loop_body
    %s15 = ssub.s32 %s10, 1
    %s16 = ssub.s32 %s10, 2
    %s17 = sadd.s32 %s10, 1
    %s18 = ssub.s32 %s10, %s17
    %p19 = scmp.eq.s32.totalorder %s18, 0
    %s21 = sadd.s32 %s20, 1
    %s22 = scalar_select %p19, %s20, %s21
    %p25 = pneg %p19
    %p26 = scmp.eq.s32.totalorder %s10, 3
    %p27 = por %p25, %p26
    %p28 = scmp.ne.s32.totalorder %s20, %s23
    %p29 = scmp.eq.s32.totalorder %s10, 0
    %p30 = por %p28, %p29
    %p31 = scmp.ne.s32.totalorder %s20, %s23
    %p32 = scmp.eq.s32.totalorder %s15, 3
    %p33 = por %p31, %p32
    %p34 = scmp.ne.s32.totalorder %s23, %s24
    %p35 = scmp.eq.s32.totalorder %s15, 0
    %p36 = por %p34, %p35
    %p37 = scmp.ne.s32.totalorder %s23, %s24
    %p38 = scmp.eq.s32.totalorder %s16, 3
    %p39 = por %p37, %p38
    %p41 = scmp.ne.s32.totalorder %s24, %s40
    %p42 = scmp.eq.s32.totalorder %s16, 0
    %p43 = por %p41, %p42
    %s45 = sadd.s32 %s44, 1
    %p48 = scmp.eq.s32.totalorder %s10, 3
    %p49 = scmp.ne.s32.totalorder %s44, %s46
    %p50 = scmp.eq.s32.totalorder %s10, 0
    %p51 = por %p49, %p50
    %p52 = scmp.ne.s32.totalorder %s44, %s46
    %p53 = scmp.eq.s32.totalorder %s15, 3
    %p54 = por %p52, %p53
    %p55 = scmp.ne.s32.totalorder %s46, %s47
    %p56 = scmp.eq.s32.totalorder %s15, 0
    %p57 = por %p55, %p56
    %p58 = scmp.ne.s32.totalorder %s46, %s47
    %p59 = scmp.eq.s32.totalorder %s16, 3
    %p60 = por %p58, %p59
    %p62 = scmp.ne.s32.totalorder %s47, %s61
    %p63 = scmp.eq.s32.totalorder %s16, 0
    %p64 = por %p62, %p63
    %s66 = sadd.s32 %s65, 1
    %p69 = scmp.eq.s32.totalorder %s10, 3
    %p70 = scmp.ne.s32.totalorder %s65, %s67
    %p71 = scmp.eq.s32.totalorder %s10, 0
    %p72 = por %p70, %p71
    %p73 = scmp.ne.s32.totalorder %s65, %s67
    %p74 = scmp.eq.s32.totalorder %s15, 3
    %p75 = por %p73, %p74
    %p76 = scmp.ne.s32.totalorder %s67, %s68
    %p77 = scmp.eq.s32.totalorder %s15, 0
    %p78 = por %p76, %p77
    %p79 = scmp.ne.s32.totalorder %s67, %s68
    %p80 = scmp.eq.s32.totalorder %s16, 3
    %p81 = por %p79, %p80
    %p83 = scmp.ne.s32.totalorder %s68, %s82
    %p84 = scmp.eq.s32.totalorder %s16, 0
    %p85 = por %p83, %p84
    %s87 = sadd.s32 %s86, 1
    %p90 = scmp.eq.s32.totalorder %s10, 3
    %p91 = scmp.ne.s32.totalorder %s86, %s88
    %p92 = scmp.eq.s32.totalorder %s10, 0
    %p93 = por %p91, %p92
    %p94 = scmp.ne.s32.totalorder %s86, %s88
    %p95 = scmp.eq.s32.totalorder %s15, 3
    %p96 = por %p94, %p95
    %p97 = scmp.ne.s32.totalorder %s88, %s89
    %p98 = scmp.eq.s32.totalorder %s15, 0
    %p99 = por %p97, %p98
    %p100 = scmp.ne.s32.totalorder %s88, %s89
    %p101 = scmp.eq.s32.totalorder %s16, 3
    %p102 = por %p100, %p101
    %p104 = scmp.ne.s32.totalorder %s89, %s103
    %p105 = scmp.eq.s32.totalorder %s16, 0
    %p106 = por %p104, %p105
    %s107 = ssub.s32 %s10, %s17
    %p108 = scmp.eq.s32.totalorder %s107, 0
    %s110 = sadd.s32 %s109, 1
    %s111 = scalar_select %p108, %s109, %s110
    %p114 = pneg %p108
    %p115 = scmp.eq.s32.totalorder %s10, 3
    %p116 = por %p114, %p115
    %p117 = scmp.ne.s32.totalorder %s109, %s112
    %p118 = scmp.eq.s32.totalorder %s10, 0
    %p119 = por %p117, %p118
    %p120 = scmp.ne.s32.totalorder %s109, %s112
    %p121 = scmp.eq.s32.totalorder %s15, 3
    %p122 = por %p120, %p121
    %p123 = scmp.ne.s32.totalorder %s112, %s113
    %p124 = scmp.eq.s32.totalorder %s15, 0
    %p125 = por %p123, %p124
    %p126 = scmp.ne.s32.totalorder %s112, %s113
    %p127 = scmp.eq.s32.totalorder %s16, 3
    %p128 = por %p126, %p127
    %p130 = scmp.ne.s32.totalorder %s113, %s129
    %p131 = scmp.eq.s32.totalorder %s16, 0
    %p132 = por %p130, %p131
    %p133 = scmp.le.s32.totalorder 1, %s10
    %p134 = scmp.lt.s32.totalorder %s10, 5
    %p135 = pnand %p133, %p134
    %p136 = pneg %p135
    // Predicated region
    $region9: #{gcn_forward.4} parent=5 // pred_check
      _
    $region10: #{gcn_forward.4} parent=5 // pred_check_branch
      %138 = sbr.rel (%p135) target = $region12
    $region11: #{gcn_forward.4} parent=5 // pred_region
      %s139 = ssub.s32 %s10, 1
      // Predicated region
      $region13: #{gcn_forward.4} parent=11 // pred_check
        %p140 = pneg %p57
      $region14: #{gcn_forward.4} parent=11 // pred_check_branch
        %142 = sbr.rel (%p140) target = $region16
      $region15: #{gcn_forward.4} parent=11 // pred_region
        _
      $region16: #{gcn_forward.4} parent=11 // pred_fallthru
        _
      // Predicated region
      $region17: #{gcn_forward.4} parent=11 // pred_check
        %p143 = pneg %p78
      $region18: #{gcn_forward.4} parent=11 // pred_check_branch
        %145 = sbr.rel (%p143) target = $region20
      $region19: #{gcn_forward.4} parent=11 // pred_region
        _
      $region20: #{gcn_forward.4} parent=11 // pred_fallthru
        _
      // Predicated region
      $region21: #{gcn_forward.4} parent=11 // pred_check
        %p146 = pneg %p99
      $region22: #{gcn_forward.4} parent=11 // pred_check_branch
        %148 = sbr.rel (%p146) target = $region24
      $region23: #{gcn_forward.4} parent=11 // pred_region
        _
      $region24: #{gcn_forward.4} parent=11 // pred_fallthru
        _
    $region12: #{gcn_forward.4} parent=5 // pred_fallthru
      _
    %p149 = scmp.lt.s32.totalorder %s10, 4
    // Predicated region
    $region25: #{gcn_forward.4} parent=5 // pred_check
      %p150 = pneg %p149
    $region26: #{gcn_forward.4} parent=5 // pred_check_branch
      %152 = sbr.rel (%p150) target = $region28
    $region27: #{gcn_forward.4} parent=5 // pred_region
      // Predicated region
      $region29: #{gcn_forward.4} parent=27 // pred_check
        %p153 = pneg %p30
      $region30: #{gcn_forward.4} parent=27 // pred_check_branch
        %155 = sbr.rel (%p153) target = $region32
      $region31: #{gcn_forward.4} parent=27 // pred_region
        %s156 = smul.u32 8, %s10
        %p157 = scmp.lt.s32.totalorder %s156, 31
        %s158 = scalar_select %p157, %s156, 31
        %s159 = smul.addr %s158, 2
        %s160 = smul.addr %s159, 4
        %s161 = scalar_lea.vmem %s0, %s160
        %s162 = smul.u32 8, %s10
      $region32: #{gcn_forward.4} parent=27 // pred_fallthru
        _
    $region28: #{gcn_forward.4} parent=5 // pred_fallthru
      _
    %p163 = scmp.le.s32.totalorder 1, %s10
    %p164 = scmp.lt.s32.totalorder %s10, 5
    %p165 = pnand %p163, %p164
    %p166 = pneg %p165
    // Predicated region
    $region33: #{gcn_forward.4} parent=5 // pred_check
      _
    $region34: #{gcn_forward.4} parent=5 // pred_check_branch
      %168 = sbr.rel (%p165) target = $region36
    $region35: #{gcn_forward.4} parent=5 // pred_region
      %s169 = ssub.s32 %s10, 1
      %s170 = smul.u32 8, %s15
      %p171 = scmp.lt.s32.totalorder %s170, 31
      %s172 = scalar_select %p171, %s170, 31
      %s173 = smul.addr %s172, 2
      %s174 = smul.addr %s173, 4
      %s175 = scalar_lea.vmem %s0, %s174
      %p176 = pneg %p36
      %p177 = pneg %p33
      %p178 = pneg %p57
      %p179 = pneg %p54
      %p180 = pneg %p78
      %p181 = pneg %p75
      %p182 = pneg %p99
      %p183 = pneg %p96
      %p184 = pneg %p125
      %p185 = pneg %p122
      %s186 = smul.u32 8, %s15
      %p187 = scmp.lt.s32.totalorder %s186, 31
      %s188 = scalar_select %p187, %s186, 31
      %s189 = smul.addr %s188, 4
      %s190 = scalar_lea.vmem %s4, %s189
      %s191 = smul.u32 8, %s15
      %p192 = scmp.lt.s32.totalorder %s191, 31
      %s193 = scalar_select %p192, %s191, 31
      %s194 = smul.addr %s193, 2
      %s195 = smul.addr %s194, 4
      %s196 = scalar_lea.vmem %s0, %s195
      %s197 = smul.u32 8, %s15
      %s198 = smul.u32 8, %s15
      %p199 = scmp.lt.s32.totalorder %s198, 31
      %s200 = scalar_select %p199, %s198, 31
      %s201 = smul.addr %s200, 4
      %s202 = scalar_lea.vmem %s4, %s201
      %s203 = smul.u32 8, %s15
      %v205 = vld [vmem:[%s196] sm:$0xff]
      %v206 = vld [vmem:[%s196 + $0x8] sm:$0xff]
      %v207 = vld [vmem:[%s196 + $0x10] sm:$0xff]
      %v208 = vld [vmem:[%s196 + $0x18] sm:$0xff]
      %v209 = vld [vmem:[%s196 + $0x20] sm:$0xff]
      %v210 = vld [vmem:[%s196 + $0x28] sm:$0xff]
      %v211 = vld [vmem:[%s196 + $0x30] sm:$0xff]
      %v212 = vld [vmem:[%s196 + $0x38] sm:$0xff]
      %v213 = vld [vmem:[%s1] sm:$0xf]
      %v214 = vld [vmem:[%s1 + $0x4] sm:$0xf]
      %v215 = vld [vmem:[%s1 + $0x8] sm:$0xf]
      %v216 = vld [vmem:[%s1 + $0xc] sm:$0xf]
      %v217 = vld [vmem:[%s1 + $0x10] sm:$0xf]
      %v218 = vld [vmem:[%s1 + $0x14] sm:$0xf]
      %v219 = vld [vmem:[%s1 + $0x18] sm:$0xf]
      %v220 = vld [vmem:[%s1 + $0x1c] sm:$0xf]
      %v221 = vld [vmem:[%s1 + $0x20] sm:$0xf]
      %v222 = vld [vmem:[%s1 + $0x24] sm:$0xf]
      %v223 = vld [vmem:[%s1 + $0x28] sm:$0xf]
      %v224 = vld [vmem:[%s1 + $0x2c] sm:$0xf]
      %v225 = vld [vmem:[%s1 + $0x30] sm:$0xf]
      %v226 = vld [vmem:[%s1 + $0x34] sm:$0xf]
      %v227 = vld [vmem:[%s1 + $0x38] sm:$0xf]
      %v228 = vld [vmem:[%s1 + $0x3c] sm:$0xf]
      %v229 = vld [vmem:[%s1 + $0x40] sm:$0xf]
      %v230 = vld [vmem:[%s1 + $0x44] sm:$0xf]
      %v231 = vld [vmem:[%s1 + $0x48] sm:$0xf]
      %v232 = vld [vmem:[%s1 + $0x4c] sm:$0xf]
      %v233 = vld [vmem:[%s1 + $0x50] sm:$0xf]
      %v234 = vld [vmem:[%s1 + $0x54] sm:$0xf]
      %v235 = vld [vmem:[%s1 + $0x58] sm:$0xf]
      %v236 = vld [vmem:[%s1 + $0x5c] sm:$0xf]
      %v237 = vld [vmem:[%s1 + $0x60] sm:$0xf]
      %v238 = vld [vmem:[%s1 + $0x64] sm:$0xf]
      %v239 = vld [vmem:[%s1 + $0x68] sm:$0xf]
      %v240 = vld [vmem:[%s1 + $0x6c] sm:$0xf]
      %v241 = vld [vmem:[%s1 + $0x70] sm:$0xf]
      %v242 = vld [vmem:[%s1 + $0x74] sm:$0xf]
      %v243 = vld [vmem:[%s1 + $0x78] sm:$0xf]
      %v244 = vld [vmem:[%s1 + $0x7c] sm:$0xf]
      %v245 = vld [vmem:[%s2] sm:$0x1]
      %v247 = vlaneseq
      %v248 = vshrl.u32 %v247, 7
      %v249 = vsub.s32 0, %v248
      %v250 = vrot.slane %v245, %v249
      %v260 = vunpack.c.l.b16 %v205
      %v261 = vunpack.c.h.b16 %v205
      %v262 = vunpack.c.l.b16 %v206
      %v263 = vunpack.c.h.b16 %v206
      %v264 = vunpack.c.l.b16 %v207
      %v265 = vunpack.c.h.b16 %v207
      %v266 = vunpack.c.l.b16 %v208
      %v267 = vunpack.c.h.b16 %v208
      %v268 = vunpack.c.l.b16 %v209
      %v269 = vunpack.c.h.b16 %v209
      %v270 = vunpack.c.l.b16 %v210
      %v271 = vunpack.c.h.b16 %v210
      %v272 = vunpack.c.l.b16 %v211
      %v273 = vunpack.c.h.b16 %v211
      %v274 = vunpack.c.l.b16 %v212
      %v275 = vunpack.c.h.b16 %v212
      %v276 = vpack.c.b16 %v262, %v260
      %v277 = vpack.c.b16 %v263, %v261
      %v278 = vpack.c.b16 %v266, %v264
      %v279 = vpack.c.b16 %v267, %v265
      %v280 = vpack.c.b16 %v270, %v268
      %v281 = vpack.c.b16 %v271, %v269
      %v282 = vpack.c.b16 %v274, %v272
      %v283 = vpack.c.b16 %v275, %v273
      %v324 = vunpack.c.l.b16 %v213
      %v325 = vunpack.c.l.b16 %v214
      %v326 = vunpack.c.l.b16 %v215
      %v327 = vunpack.c.l.b16 %v216
      %v328 = vunpack.c.l.b16 %v217
      %v329 = vunpack.c.l.b16 %v218
      %v330 = vunpack.c.l.b16 %v219
      %v331 = vunpack.c.l.b16 %v220
      %v332 = vunpack.c.l.b16 %v221
      %v333 = vunpack.c.l.b16 %v222
      %v334 = vunpack.c.l.b16 %v223
      %v335 = vunpack.c.l.b16 %v224
      %v336 = vunpack.c.l.b16 %v225
      %v337 = vunpack.c.l.b16 %v226
      %v338 = vunpack.c.l.b16 %v227
      %v339 = vunpack.c.l.b16 %v228
      %v340 = vunpack.c.l.b16 %v229
      %v341 = vunpack.c.l.b16 %v230
      %v342 = vunpack.c.l.b16 %v231
      %v343 = vunpack.c.l.b16 %v232
      %v344 = vunpack.c.l.b16 %v233
      %v345 = vunpack.c.l.b16 %v234
      %v346 = vunpack.c.l.b16 %v235
      %v347 = vunpack.c.l.b16 %v236
      %v348 = vunpack.c.l.b16 %v237
      %v349 = vunpack.c.l.b16 %v238
      %v350 = vunpack.c.l.b16 %v239
      %v351 = vunpack.c.l.b16 %v240
      %v352 = vunpack.c.l.b16 %v241
      %v353 = vunpack.c.l.b16 %v242
      %v354 = vunpack.c.l.b16 %v243
      %v355 = vunpack.c.l.b16 %v244
      %v356 = vpack.c.b16 %v325, %v324
      %v357 = vpack.c.b16 %v327, %v326
      %v358 = vpack.c.b16 %v329, %v328
      %v359 = vpack.c.b16 %v331, %v330
      %v360 = vpack.c.b16 %v333, %v332
      %v361 = vpack.c.b16 %v335, %v334
      %v362 = vpack.c.b16 %v337, %v336
      %v363 = vpack.c.b16 %v339, %v338
      %v364 = vpack.c.b16 %v341, %v340
      %v365 = vpack.c.b16 %v343, %v342
      %v366 = vpack.c.b16 %v345, %v344
      %v367 = vpack.c.b16 %v347, %v346
      %v368 = vpack.c.b16 %v349, %v348
      %v369 = vpack.c.b16 %v351, %v350
      %v370 = vpack.c.b16 %v353, %v352
      %v371 = vpack.c.b16 %v355, %v354
      %388 = vmatprep.subr.bf16.mxu0 0
      %389 = vmatpush1.bf16.msra.mxu0 %v363
      %390 = vmatprep.subr.bf16.mxu0 0
      %391 = vmatpush1.bf16.msra.mxu0 %v362
      %392 = vmatprep.subr.bf16.mxu0 0
      %393 = vmatpush1.bf16.msra.mxu0 %v361
      %394 = vmatprep.subr.bf16.mxu0 0
      %395 = vmatpush1.bf16.msra.mxu0 %v360
      %396 = vmatprep.subr.bf16.mxu0 0
      %397 = vmatpush1.bf16.msra.mxu0 %v359
      %398 = vmatprep.subr.bf16.mxu0 0
      %399 = vmatpush1.bf16.msra.mxu0 %v358
      %400 = vmatprep.subr.bf16.mxu0 0
      %401 = vmatpush1.bf16.msra.mxu0 %v357
      %402 = vmatprep.subr.bf16.mxu0 0
      %403 = vmatpush1.bf16.msra.mxu0 %v356
      %404 = vmatprep.subr.bf16.mxu0 0
      %405 = vmatpush2.bf16.msra.mxu0 %v371
      %406 = vmatprep.subr.bf16.mxu0 0
      %407 = vmatpush2.bf16.msra.mxu0 %v370
      %408 = vmatprep.subr.bf16.mxu0 0
      %409 = vmatpush2.bf16.msra.mxu0 %v369
      %410 = vmatprep.subr.bf16.mxu0 0
      %411 = vmatpush2.bf16.msra.mxu0 %v368
      %412 = vmatprep.subr.bf16.mxu0 0
      %413 = vmatpush2.bf16.msra.mxu0 %v367
      %414 = vmatprep.subr.bf16.mxu0 0
      %415 = vmatpush2.bf16.msra.mxu0 %v366
      %416 = vmatprep.subr.bf16.mxu0 0
      %417 = vmatpush2.bf16.msra.mxu0 %v365
      %418 = vmatprep.subr.bf16.mxu0 0
      %419 = vmatpush2.bf16.msra.mxu0 %v364
      %420 = vmatprep.mubr.bf16.mxu0 %v277
      %421 = vmatmul.mubr.bf16.gmra.mxu0 %v276
      %v422 = vpop.f32.mrf.mxu0
      %v423 = vadd.f32 %v250, %v422
      %v424 = vpop.f32.mrf.mxu0
      %v425 = vpop.f32.mrf.mxu0
      %v426 = vadd.f32 %v250, %v425
      %v427 = vpop.f32.mrf.mxu0
      %428 = vmatprep.mubr.bf16.mxu0 %v279
      %429 = vmatmul.mubr.bf16.gmra.mxu0 %v278
      %v430 = vpop.f32.mrf.mxu0
      %v431 = vadd.f32 %v250, %v430
      %v432 = vpop.f32.mrf.mxu0
      %v433 = vpop.f32.mrf.mxu0
      %v434 = vadd.f32 %v250, %v433
      %v435 = vpop.f32.mrf.mxu0
      %436 = vmatprep.mubr.bf16.mxu0 %v281
      %437 = vmatmul.mubr.bf16.gmra.mxu0 %v280
      %v438 = vpop.f32.mrf.mxu0
      %v439 = vadd.f32 %v250, %v438
      %v440 = vpop.f32.mrf.mxu0
      %v441 = vpop.f32.mrf.mxu0
      %v442 = vadd.f32 %v250, %v441
      %v443 = vpop.f32.mrf.mxu0
      %444 = vmatprep.mubr.bf16.mxu0 %v283
      %445 = vmatmul.mubr.bf16.gmra.mxu0 %v282
      %v446 = vpop.f32.mrf.mxu0
      %v447 = vadd.f32 %v250, %v446
      %v448 = vpop.f32.mrf.mxu0
      %v449 = vpop.f32.mrf.mxu0
      %v450 = vadd.f32 %v250, %v449
      %v451 = vpop.f32.mrf.mxu0
      %452 = vdwg.mxu0
      %v453 = vmax.f32 %v423, 0.0
      %v454 = vmax.f32 %v426, 0.0
      %v455 = vmax.f32 %v431, 0.0
      %v456 = vmax.f32 %v434, 0.0
      %v457 = vmax.f32 %v439, 0.0
      %v458 = vmax.f32 %v442, 0.0
      %v459 = vmax.f32 %v447, 0.0
      %v460 = vmax.f32 %v450, 0.0
      %v461 = vpack.c.bf16 %v454, %v453
      %v462 = vpack.c.bf16 %v456, %v455
      %v463 = vpack.c.bf16 %v458, %v457
      %v464 = vpack.c.bf16 %v460, %v459
      %v465 = vld [vmem:[%s3] sm:$0xf]
      %v466 = vld [vmem:[%s3 + $0x4] sm:$0xf]
      %v467 = vld [vmem:[%s3 + $0x8] sm:$0xf]
      %v468 = vld [vmem:[%s3 + $0xc] sm:$0xf]
      %v469 = vld [vmem:[%s3 + $0x10] sm:$0xf]
      %v470 = vld [vmem:[%s3 + $0x14] sm:$0xf]
      %v471 = vld [vmem:[%s3 + $0x18] sm:$0xf]
      %v472 = vld [vmem:[%s3 + $0x1c] sm:$0xf]
      %v473 = vld [vmem:[%s3 + $0x20] sm:$0xf]
      %v474 = vld [vmem:[%s3 + $0x24] sm:$0xf]
      %v475 = vld [vmem:[%s3 + $0x28] sm:$0xf]
      %v476 = vld [vmem:[%s3 + $0x2c] sm:$0xf]
      %v477 = vld [vmem:[%s3 + $0x30] sm:$0xf]
      %v478 = vld [vmem:[%s3 + $0x34] sm:$0xf]
      %v479 = vld [vmem:[%s3 + $0x38] sm:$0xf]
      %v480 = vld [vmem:[%s3 + $0x3c] sm:$0xf]
      %v497 = vunpack.c.l.b16 %v465
      %v498 = vunpack.c.l.b16 %v466
      %v499 = vunpack.c.l.b16 %v467
      %v500 = vunpack.c.l.b16 %v468
      %v501 = vunpack.c.l.b16 %v469
      %v502 = vunpack.c.l.b16 %v470
      %v503 = vunpack.c.l.b16 %v471
      %v504 = vunpack.c.l.b16 %v472
      %v505 = vunpack.c.l.b16 %v473
      %v506 = vunpack.c.l.b16 %v474
      %v507 = vunpack.c.l.b16 %v475
      %v508 = vunpack.c.l.b16 %v476
      %v509 = vunpack.c.l.b16 %v477
      %v510 = vunpack.c.l.b16 %v478
      %v511 = vunpack.c.l.b16 %v479
      %v512 = vunpack.c.l.b16 %v480
      %v513 = vpack.c.b16 %v498, %v497
      %v514 = vpack.c.b16 %v500, %v499
      %v515 = vpack.c.b16 %v502, %v501
      %v516 = vpack.c.b16 %v504, %v503
      %v517 = vpack.c.b16 %v506, %v505
      %v518 = vpack.c.b16 %v508, %v507
      %v519 = vpack.c.b16 %v510, %v509
      %v520 = vpack.c.b16 %v512, %v511
      %529 = vmatprep.subr.bf16.mxu0 0
      %530 = vmatpush1.bf16.msra.mxu0 %v520
      %531 = vmatprep.subr.bf16.mxu0 0
      %532 = vmatpush1.bf16.msra.mxu0 %v519
      %533 = vmatprep.subr.bf16.mxu0 0
      %534 = vmatpush1.bf16.msra.mxu0 %v518
      %535 = vmatprep.subr.bf16.mxu0 0
      %536 = vmatpush1.bf16.msra.mxu0 %v517
      %537 = vmatprep.subr.bf16.mxu0 0
      %538 = vmatpush1.bf16.msra.mxu0 %v516
      %539 = vmatprep.subr.bf16.mxu0 0
      %540 = vmatpush1.bf16.msra.mxu0 %v515
      %541 = vmatprep.subr.bf16.mxu0 0
      %542 = vmatpush1.bf16.msra.mxu0 %v514
      %543 = vmatprep.subr.bf16.mxu0 0
      %544 = vmatpush1.bf16.msra.mxu0 %v513
      %545 = vmatprep.subr.bf16.mxu0 0
      %546 = vmatpush2.bf16.msra.mxu0 0
      %547 = vmatprep.subr.bf16.mxu0 0
      %548 = vmatpush2.bf16.msra.mxu0 0
      %549 = vmatprep.subr.bf16.mxu0 0
      %550 = vmatpush2.bf16.msra.mxu0 0
      %551 = vmatprep.subr.bf16.mxu0 0
      %552 = vmatpush2.bf16.msra.mxu0 0
      %553 = vmatprep.subr.bf16.mxu0 0
      %554 = vmatpush2.bf16.msra.mxu0 0
      %555 = vmatprep.subr.bf16.mxu0 0
      %556 = vmatpush2.bf16.msra.mxu0 0
      %557 = vmatprep.subr.bf16.mxu0 0
      %558 = vmatpush2.bf16.msra.mxu0 0
      %559 = vmatprep.subr.bf16.mxu0 0
      %560 = vmatpush2.bf16.msra.mxu0 0
      %561 = vmatprep.mubr.bf16.mxu0 0
      %562 = vmatmul.mubr.bf16.gmra.mxu0 %v461
      %v563 = vpop.f32.mrf.mxu0
      %v564 = vadd.f32 0.0, %v563
      %v565 = vpop.f32.mrf.mxu0
      %v566 = vpop.f32.mrf.mxu0
      %v567 = vadd.f32 0.0, %v566
      %v568 = vpop.f32.mrf.mxu0
      %569 = vmatprep.mubr.bf16.mxu0 0
      %570 = vmatmul.mubr.bf16.gmra.mxu0 %v462
      %v571 = vpop.f32.mrf.mxu0
      %v572 = vadd.f32 0.0, %v571
      %v573 = vpop.f32.mrf.mxu0
      %v574 = vpop.f32.mrf.mxu0
      %v575 = vadd.f32 0.0, %v574
      %v576 = vpop.f32.mrf.mxu0
      %577 = vmatprep.mubr.bf16.mxu0 0
      %578 = vmatmul.mubr.bf16.gmra.mxu0 %v463
      %v579 = vpop.f32.mrf.mxu0
      %v580 = vadd.f32 0.0, %v579
      %v581 = vpop.f32.mrf.mxu0
      %v582 = vpop.f32.mrf.mxu0
      %v583 = vadd.f32 0.0, %v582
      %v584 = vpop.f32.mrf.mxu0
      %585 = vmatprep.mubr.bf16.mxu0 0
      %586 = vmatmul.mubr.bf16.gmra.mxu0 %v464
      %v587 = vpop.f32.mrf.mxu0
      %v588 = vadd.f32 0.0, %v587
      %v589 = vpop.f32.mrf.mxu0
      %v590 = vpop.f32.mrf.mxu0
      %v591 = vadd.f32 0.0, %v590
      %v592 = vpop.f32.mrf.mxu0
      %593 = vdwg.mxu0
      %v594 = vpack.c.bf16 %v567, %v564
      %v595 = vpack.c.bf16 %v575, %v572
      %v596 = vpack.c.bf16 %v583, %v580
      %v597 = vpack.c.bf16 %v591, %v588
      %v602 = vunpack.c.l.b16 %v594
      %v603 = vunpack.c.h.b16 %v594
      %v604 = vunpack.c.l.b16 %v595
      %v605 = vunpack.c.h.b16 %v595
      %v606 = vunpack.c.l.b16 %v596
      %v607 = vunpack.c.h.b16 %v596
      %v608 = vunpack.c.l.b16 %v597
      %v609 = vunpack.c.h.b16 %v597
      %v610 = vpack.c.b16 %v602, %v602
      %v611 = vpack.c.b16 %v603, %v603
      %v612 = vpack.c.b16 %v604, %v604
      %v613 = vpack.c.b16 %v605, %v605
      %v614 = vpack.c.b16 %v606, %v606
      %v615 = vpack.c.b16 %v607, %v607
      %v616 = vpack.c.b16 %v608, %v608
      %v617 = vpack.c.b16 %v609, %v609
      %626 = vst [vmem:[%s202] sm:$0xf] %v610
      %627 = vst [vmem:[%s202 + $0x4] sm:$0xf] %v611
      %628 = vst [vmem:[%s202 + $0x8] sm:$0xf] %v612
      %629 = vst [vmem:[%s202 + $0xc] sm:$0xf] %v613
      %630 = vst [vmem:[%s202 + $0x10] sm:$0xf] %v614
      %631 = vst [vmem:[%s202 + $0x14] sm:$0xf] %v615
      %632 = vst [vmem:[%s202 + $0x18] sm:$0xf] %v616
      %633 = vst [vmem:[%s202 + $0x1c] sm:$0xf] %v617
      %s634 = smul.u32 8, %s15
      %p635 = scmp.lt.s32.totalorder %s634, 31
      %s636 = scalar_select %p635, %s634, 31
      %s637 = smul.addr %s636, 4
      %s638 = scalar_lea.vmem %s4, %s637
      // Predicated region
      $region37: #{gcn_forward.4} parent=35 // pred_check
        %p639 = pneg %p122
      $region38: #{gcn_forward.4} parent=35 // pred_check_branch
        %641 = sbr.rel (%p639) target = $region40
      $region39: #{gcn_forward.4} parent=35 // pred_region
        %s642 = smul.u32 8, %s15
      $region40: #{gcn_forward.4} parent=35 // pred_fallthru
        _
    $region36: #{gcn_forward.4} parent=5 // pred_fallthru
      _
    %p643 = scmp.le.s32.totalorder 2, %s10
    // Predicated region
    $region41: #{gcn_forward.4} parent=5 // pred_check
      %p644 = pneg %p643
    $region42: #{gcn_forward.4} parent=5 // pred_check_branch
      %646 = sbr.rel (%p644) target = $region44
    $region43: #{gcn_forward.4} parent=5 // pred_region
      %s647 = ssub.s32 %s10, 2
      // Predicated region
      $region45: #{gcn_forward.4} parent=43 // pred_check
        %p648 = pneg %p128
      $region46: #{gcn_forward.4} parent=43 // pred_check_branch
        %650 = sbr.rel (%p648) target = $region48
      $region47: #{gcn_forward.4} parent=43 // pred_region
        %s651 = smul.u32 8, %s16
        %p652 = scmp.lt.s32.totalorder %s651, 31
        %s653 = scalar_select %p652, %s651, 31
        %s654 = smul.addr %s653, 4
        %s655 = scalar_lea.vmem %s4, %s654
      $region48: #{gcn_forward.4} parent=43 // pred_fallthru
        _
    $region44: #{gcn_forward.4} parent=5 // pred_fallthru
      _
  $region6: #{gcn_forward.4} parent=0 // loop_footer
    %s14 = sadd.s32 1, %s10
  $region7: #{gcn_forward.4} parent=0 // loop_footer_branch
    %9 = sbr.rel target = $region3
  $region8: #{gcn_forward.4} parent=0 // loop_exit
    _

// kernel: gcn_forward.5
$region0: #{gcn_forward.5}
  #allocation0 [shape = 'u32[]', space=smem, size = 0x4, offset = 0x4, fixed_abs, tag = 'smem constant byte address 0x4 - core index']
  #allocation1 [shape = 'u32[144,128]{1,0:T(1,128)}', space=vmem, size = 0x12000, scoped, tag = 'internal scratch']
  %s0 = inlined_call_operand.vmem [shape: bf16[256,256], index: 0, kind: input, shape index: {}]
  %s1 = inlined_call_operand.vmem [shape: bf16[256,128], index: 1, kind: input, shape index: {}]
  %s2 = inlined_call_operand.vmem [shape: f32[1,128], index: 2, kind: input, shape index: {}]
  %s3 = inlined_call_operand.vmem [shape: f32[256,128], index: 3, kind: output, shape index: {}]
  %s4 = sld [smem:[#allocation0]]
  $region45: #{gcn_forward.5} parent=0
    _
  %s6 = ssub.s32 1, %s4
  %s7 = scalar_select 0, %s6, %s4
  loop: start=0, step=1, limit=6
  $region2: #{gcn_forward.5} parent=0 // loop_pre_header
    _
  $region3: #{gcn_forward.5} parent=0 // loop_header
    %s9 = sphi 0, %s13
    %p10 = scmp.ge.s32.totalorder %s9, 6
    %s19 = sphi 0, %s21
    %s22 = sphi 0, %s19
    %s23 = sphi 0, %s22
    %s39 = sphi 0, %s23
    %s43 = sphi 0, %s43
    %s45 = sphi 0, %s43
    %s46 = sphi 0, %s45
    %s60 = sphi 0, %s46
    %s64 = sphi 0, %s64
    %s66 = sphi 0, %s64
    %s67 = sphi 0, %s66
    %s81 = sphi 0, %s67
    %s87 = sphi 0, %s89
    %s90 = sphi 0, %s87
    %s91 = sphi 0, %s90
    %s107 = sphi 0, %s91
  $region4: #{gcn_forward.5} parent=0 // loop_header_branch
    %12 = sbr.rel (%p10) target = $region8
  $region5: #{gcn_forward.5} parent=0 // loop_body
    %s14 = ssub.s32 %s9, 1
    %s15 = ssub.s32 %s9, 2
    %s16 = sadd.s32 %s9, 1
    %s17 = ssub.s32 %s9, %s16
    %p18 = scmp.eq.s32.totalorder %s17, 0
    %s20 = sadd.s32 %s19, 1
    %s21 = scalar_select %p18, %s19, %s20
    %p24 = pneg %p18
    %p25 = scmp.eq.s32.totalorder %s9, 3
    %p26 = por %p24, %p25
    %p27 = scmp.ne.s32.totalorder %s19, %s22
    %p28 = scmp.eq.s32.totalorder %s9, 0
    %p29 = por %p27, %p28
    %p30 = scmp.ne.s32.totalorder %s19, %s22
    %p31 = scmp.eq.s32.totalorder %s14, 3
    %p32 = por %p30, %p31
    %p33 = scmp.ne.s32.totalorder %s22, %s23
    %p34 = scmp.eq.s32.totalorder %s14, 0
    %p35 = por %p33, %p34
    %p36 = scmp.ne.s32.totalorder %s22, %s23
    %p37 = scmp.eq.s32.totalorder %s15, 3
    %p38 = por %p36, %p37
    %p40 = scmp.ne.s32.totalorder %s23, %s39
    %p41 = scmp.eq.s32.totalorder %s15, 0
    %p42 = por %p40, %p41
    %s44 = sadd.s32 %s43, 1
    %p47 = scmp.eq.s32.totalorder %s9, 3
    %p48 = scmp.ne.s32.totalorder %s43, %s45
    %p49 = scmp.eq.s32.totalorder %s9, 0
    %p50 = por %p48, %p49
    %p51 = scmp.ne.s32.totalorder %s43, %s45
    %p52 = scmp.eq.s32.totalorder %s14, 3
    %p53 = por %p51, %p52
    %p54 = scmp.ne.s32.totalorder %s45, %s46
    %p55 = scmp.eq.s32.totalorder %s14, 0
    %p56 = por %p54, %p55
    %p57 = scmp.ne.s32.totalorder %s45, %s46
    %p58 = scmp.eq.s32.totalorder %s15, 3
    %p59 = por %p57, %p58
    %p61 = scmp.ne.s32.totalorder %s46, %s60
    %p62 = scmp.eq.s32.totalorder %s15, 0
    %p63 = por %p61, %p62
    %s65 = sadd.s32 %s64, 1
    %p68 = scmp.eq.s32.totalorder %s9, 3
    %p69 = scmp.ne.s32.totalorder %s64, %s66
    %p70 = scmp.eq.s32.totalorder %s9, 0
    %p71 = por %p69, %p70
    %p72 = scmp.ne.s32.totalorder %s64, %s66
    %p73 = scmp.eq.s32.totalorder %s14, 3
    %p74 = por %p72, %p73
    %p75 = scmp.ne.s32.totalorder %s66, %s67
    %p76 = scmp.eq.s32.totalorder %s14, 0
    %p77 = por %p75, %p76
    %p78 = scmp.ne.s32.totalorder %s66, %s67
    %p79 = scmp.eq.s32.totalorder %s15, 3
    %p80 = por %p78, %p79
    %p82 = scmp.ne.s32.totalorder %s67, %s81
    %p83 = scmp.eq.s32.totalorder %s15, 0
    %p84 = por %p82, %p83
    %s85 = ssub.s32 %s9, %s16
    %p86 = scmp.eq.s32.totalorder %s85, 0
    %s88 = sadd.s32 %s87, 1
    %s89 = scalar_select %p86, %s87, %s88
    %p92 = pneg %p86
    %p93 = scmp.eq.s32.totalorder %s9, 3
    %p94 = por %p92, %p93
    %p95 = scmp.ne.s32.totalorder %s87, %s90
    %p96 = scmp.eq.s32.totalorder %s9, 0
    %p97 = por %p95, %p96
    %p98 = scmp.ne.s32.totalorder %s87, %s90
    %p99 = scmp.eq.s32.totalorder %s14, 3
    %p100 = por %p98, %p99
    %p101 = scmp.ne.s32.totalorder %s90, %s91
    %p102 = scmp.eq.s32.totalorder %s14, 0
    %p103 = por %p101, %p102
    %p104 = scmp.ne.s32.totalorder %s90, %s91
    %p105 = scmp.eq.s32.totalorder %s15, 3
    %p106 = por %p104, %p105
    %p108 = scmp.ne.s32.totalorder %s91, %s107
    %p109 = scmp.eq.s32.totalorder %s15, 0
    %p110 = por %p108, %p109
    %p111 = scmp.le.s32.totalorder 1, %s9
    %p112 = scmp.lt.s32.totalorder %s9, 5
    %p113 = pnand %p111, %p112
    %p114 = pneg %p113
    // Predicated region
    $region9: #{gcn_forward.5} parent=5 // pred_check
      _
    $region10: #{gcn_forward.5} parent=5 // pred_check_branch
      %116 = sbr.rel (%p113) target = $region12
    $region11: #{gcn_forward.5} parent=5 // pred_region
      %s117 = ssub.s32 %s9, 1
      // Predicated region
      $region13: #{gcn_forward.5} parent=11 // pred_check
        %p118 = pneg %p56
      $region14: #{gcn_forward.5} parent=11 // pred_check_branch
        %120 = sbr.rel (%p118) target = $region16
      $region15: #{gcn_forward.5} parent=11 // pred_region
        _
      $region16: #{gcn_forward.5} parent=11 // pred_fallthru
        _
      // Predicated region
      $region17: #{gcn_forward.5} parent=11 // pred_check
        %p121 = pneg %p77
      $region18: #{gcn_forward.5} parent=11 // pred_check_branch
        %123 = sbr.rel (%p121) target = $region20
      $region19: #{gcn_forward.5} parent=11 // pred_region
        _
      $region20: #{gcn_forward.5} parent=11 // pred_fallthru
        _
    $region12: #{gcn_forward.5} parent=5 // pred_fallthru
      _
    %p124 = scmp.lt.s32.totalorder %s9, 4
    // Predicated region
    $region21: #{gcn_forward.5} parent=5 // pred_check
      %p125 = pneg %p124
    $region22: #{gcn_forward.5} parent=5 // pred_check_branch
      %127 = sbr.rel (%p125) target = $region24
    $region23: #{gcn_forward.5} parent=5 // pred_region
      // Predicated region
      $region25: #{gcn_forward.5} parent=23 // pred_check
        %p128 = pneg %p29
      $region26: #{gcn_forward.5} parent=23 // pred_check_branch
        %130 = sbr.rel (%p128) target = $region28
      $region27: #{gcn_forward.5} parent=23 // pred_region
        %s131 = smul.u32 8, %s9
        %p132 = scmp.lt.s32.totalorder %s131, 31
        %s133 = scalar_select %p132, %s131, 31
        %s134 = smul.addr %s133, 2
        %s135 = smul.addr %s134, 4
        %s136 = scalar_lea.vmem %s0, %s135
        %s137 = smul.u32 8, %s9
      $region28: #{gcn_forward.5} parent=23 // pred_fallthru
        _
    $region24: #{gcn_forward.5} parent=5 // pred_fallthru
      _
    %p138 = scmp.le.s32.totalorder 1, %s9
    %p139 = scmp.lt.s32.totalorder %s9, 5
    %p140 = pnand %p138, %p139
    %p141 = pneg %p140
    // Predicated region
    $region29: #{gcn_forward.5} parent=5 // pred_check
      _
    $region30: #{gcn_forward.5} parent=5 // pred_check_branch
      %143 = sbr.rel (%p140) target = $region32
    $region31: #{gcn_forward.5} parent=5 // pred_region
      %s144 = ssub.s32 %s9, 1
      %s145 = smul.u32 8, %s14
      %p146 = scmp.lt.s32.totalorder %s145, 31
      %s147 = scalar_select %p146, %s145, 31
      %s148 = smul.addr %s147, 2
      %s149 = smul.addr %s148, 4
      %s150 = scalar_lea.vmem %s0, %s149
      %p151 = pneg %p35
      %p152 = pneg %p32
      %p153 = pneg %p56
      %p154 = pneg %p53
      %p155 = pneg %p77
      %p156 = pneg %p74
      %p157 = pneg %p103
      %p158 = pneg %p100
      %s159 = smul.u32 8, %s14
      %p160 = scmp.lt.s32.totalorder %s159, 31
      %s161 = scalar_select %p160, %s159, 31
      %s162 = smul.addr %s161, 8
      %s163 = scalar_lea.vmem %s3, %s162
      %s164 = smul.u32 8, %s14
      %p165 = scmp.lt.s32.totalorder %s164, 31
      %s166 = scalar_select %p165, %s164, 31
      %s167 = smul.addr %s166, 2
      %s168 = smul.addr %s167, 4
      %s169 = scalar_lea.vmem %s0, %s168
      %s170 = smul.u32 8, %s14
      %s171 = smul.u32 8, %s14
      %p172 = scmp.lt.s32.totalorder %s171, 31
      %s173 = scalar_select %p172, %s171, 31
      %s174 = smul.addr %s173, 8
      %s175 = scalar_lea.vmem %s3, %s174
      %s176 = smul.u32 8, %s14
      %v178 = vld [vmem:[%s169] sm:$0xff]
      %v179 = vld [vmem:[%s169 + $0x8] sm:$0xff]
      %v180 = vld [vmem:[%s169 + $0x10] sm:$0xff]
      %v181 = vld [vmem:[%s169 + $0x18] sm:$0xff]
      %v182 = vld [vmem:[%s169 + $0x20] sm:$0xff]
      %v183 = vld [vmem:[%s169 + $0x28] sm:$0xff]
      %v184 = vld [vmem:[%s169 + $0x30] sm:$0xff]
      %v185 = vld [vmem:[%s169 + $0x38] sm:$0xff]
      %v186 = vld [vmem:[%s1] sm:$0xf]
      %v187 = vld [vmem:[%s1 + $0x4] sm:$0xf]
      %v188 = vld [vmem:[%s1 + $0x8] sm:$0xf]
      %v189 = vld [vmem:[%s1 + $0xc] sm:$0xf]
      %v190 = vld [vmem:[%s1 + $0x10] sm:$0xf]
      %v191 = vld [vmem:[%s1 + $0x14] sm:$0xf]
      %v192 = vld [vmem:[%s1 + $0x18] sm:$0xf]
      %v193 = vld [vmem:[%s1 + $0x1c] sm:$0xf]
      %v194 = vld [vmem:[%s1 + $0x20] sm:$0xf]
      %v195 = vld [vmem:[%s1 + $0x24] sm:$0xf]
      %v196 = vld [vmem:[%s1 + $0x28] sm:$0xf]
      %v197 = vld [vmem:[%s1 + $0x2c] sm:$0xf]
      %v198 = vld [vmem:[%s1 + $0x30] sm:$0xf]
      %v199 = vld [vmem:[%s1 + $0x34] sm:$0xf]
      %v200 = vld [vmem:[%s1 + $0x38] sm:$0xf]
      %v201 = vld [vmem:[%s1 + $0x3c] sm:$0xf]
      %v202 = vld [vmem:[%s1 + $0x40] sm:$0xf]
      %v203 = vld [vmem:[%s1 + $0x44] sm:$0xf]
      %v204 = vld [vmem:[%s1 + $0x48] sm:$0xf]
      %v205 = vld [vmem:[%s1 + $0x4c] sm:$0xf]
      %v206 = vld [vmem:[%s1 + $0x50] sm:$0xf]
      %v207 = vld [vmem:[%s1 + $0x54] sm:$0xf]
      %v208 = vld [vmem:[%s1 + $0x58] sm:$0xf]
      %v209 = vld [vmem:[%s1 + $0x5c] sm:$0xf]
      %v210 = vld [vmem:[%s1 + $0x60] sm:$0xf]
      %v211 = vld [vmem:[%s1 + $0x64] sm:$0xf]
      %v212 = vld [vmem:[%s1 + $0x68] sm:$0xf]
      %v213 = vld [vmem:[%s1 + $0x6c] sm:$0xf]
      %v214 = vld [vmem:[%s1 + $0x70] sm:$0xf]
      %v215 = vld [vmem:[%s1 + $0x74] sm:$0xf]
      %v216 = vld [vmem:[%s1 + $0x78] sm:$0xf]
      %v217 = vld [vmem:[%s1 + $0x7c] sm:$0xf]
      %v218 = vld [vmem:[%s2] sm:$0x1]
      %v220 = vlaneseq
      %v221 = vshrl.u32 %v220, 7
      %v222 = vsub.s32 0, %v221
      %v223 = vrot.slane %v218, %v222
      %v233 = vunpack.c.l.b16 %v178
      %v234 = vunpack.c.h.b16 %v178
      %v235 = vunpack.c.l.b16 %v179
      %v236 = vunpack.c.h.b16 %v179
      %v237 = vunpack.c.l.b16 %v180
      %v238 = vunpack.c.h.b16 %v180
      %v239 = vunpack.c.l.b16 %v181
      %v240 = vunpack.c.h.b16 %v181
      %v241 = vunpack.c.l.b16 %v182
      %v242 = vunpack.c.h.b16 %v182
      %v243 = vunpack.c.l.b16 %v183
      %v244 = vunpack.c.h.b16 %v183
      %v245 = vunpack.c.l.b16 %v184
      %v246 = vunpack.c.h.b16 %v184
      %v247 = vunpack.c.l.b16 %v185
      %v248 = vunpack.c.h.b16 %v185
      %v249 = vpack.c.b16 %v235, %v233
      %v250 = vpack.c.b16 %v236, %v234
      %v251 = vpack.c.b16 %v239, %v237
      %v252 = vpack.c.b16 %v240, %v238
      %v253 = vpack.c.b16 %v243, %v241
      %v254 = vpack.c.b16 %v244, %v242
      %v255 = vpack.c.b16 %v247, %v245
      %v256 = vpack.c.b16 %v248, %v246
      %v297 = vunpack.c.l.b16 %v186
      %v298 = vunpack.c.l.b16 %v187
      %v299 = vunpack.c.l.b16 %v188
      %v300 = vunpack.c.l.b16 %v189
      %v301 = vunpack.c.l.b16 %v190
      %v302 = vunpack.c.l.b16 %v191
      %v303 = vunpack.c.l.b16 %v192
      %v304 = vunpack.c.l.b16 %v193
      %v305 = vunpack.c.l.b16 %v194
      %v306 = vunpack.c.l.b16 %v195
      %v307 = vunpack.c.l.b16 %v196
      %v308 = vunpack.c.l.b16 %v197
      %v309 = vunpack.c.l.b16 %v198
      %v310 = vunpack.c.l.b16 %v199
      %v311 = vunpack.c.l.b16 %v200
      %v312 = vunpack.c.l.b16 %v201
      %v313 = vunpack.c.l.b16 %v202
      %v314 = vunpack.c.l.b16 %v203
      %v315 = vunpack.c.l.b16 %v204
      %v316 = vunpack.c.l.b16 %v205
      %v317 = vunpack.c.l.b16 %v206
      %v318 = vunpack.c.l.b16 %v207
      %v319 = vunpack.c.l.b16 %v208
      %v320 = vunpack.c.l.b16 %v209
      %v321 = vunpack.c.l.b16 %v210
      %v322 = vunpack.c.l.b16 %v211
      %v323 = vunpack.c.l.b16 %v212
      %v324 = vunpack.c.l.b16 %v213
      %v325 = vunpack.c.l.b16 %v214
      %v326 = vunpack.c.l.b16 %v215
      %v327 = vunpack.c.l.b16 %v216
      %v328 = vunpack.c.l.b16 %v217
      %v329 = vpack.c.b16 %v298, %v297
      %v330 = vpack.c.b16 %v300, %v299
      %v331 = vpack.c.b16 %v302, %v301
      %v332 = vpack.c.b16 %v304, %v303
      %v333 = vpack.c.b16 %v306, %v305
      %v334 = vpack.c.b16 %v308, %v307
      %v335 = vpack.c.b16 %v310, %v309
      %v336 = vpack.c.b16 %v312, %v311
      %v337 = vpack.c.b16 %v314, %v313
      %v338 = vpack.c.b16 %v316, %v315
      %v339 = vpack.c.b16 %v318, %v317
      %v340 = vpack.c.b16 %v320, %v319
      %v341 = vpack.c.b16 %v322, %v321
      %v342 = vpack.c.b16 %v324, %v323
      %v343 = vpack.c.b16 %v326, %v325
      %v344 = vpack.c.b16 %v328, %v327
      %361 = vmatprep.subr.bf16.mxu0 0
      %362 = vmatpush1.bf16.msra.mxu0 %v336
      %363 = vmatprep.subr.bf16.mxu0 0
      %364 = vmatpush1.bf16.msra.mxu0 %v335
      %365 = vmatprep.subr.bf16.mxu0 0
      %366 = vmatpush1.bf16.msra.mxu0 %v334
      %367 = vmatprep.subr.bf16.mxu0 0
      %368 = vmatpush1.bf16.msra.mxu0 %v333
      %369 = vmatprep.subr.bf16.mxu0 0
      %370 = vmatpush1.bf16.msra.mxu0 %v332
      %371 = vmatprep.subr.bf16.mxu0 0
      %372 = vmatpush1.bf16.msra.mxu0 %v331
      %373 = vmatprep.subr.bf16.mxu0 0
      %374 = vmatpush1.bf16.msra.mxu0 %v330
      %375 = vmatprep.subr.bf16.mxu0 0
      %376 = vmatpush1.bf16.msra.mxu0 %v329
      %377 = vmatprep.subr.bf16.mxu0 0
      %378 = vmatpush2.bf16.msra.mxu0 %v344
      %379 = vmatprep.subr.bf16.mxu0 0
      %380 = vmatpush2.bf16.msra.mxu0 %v343
      %381 = vmatprep.subr.bf16.mxu0 0
      %382 = vmatpush2.bf16.msra.mxu0 %v342
      %383 = vmatprep.subr.bf16.mxu0 0
      %384 = vmatpush2.bf16.msra.mxu0 %v341
      %385 = vmatprep.subr.bf16.mxu0 0
      %386 = vmatpush2.bf16.msra.mxu0 %v340
      %387 = vmatprep.subr.bf16.mxu0 0
      %388 = vmatpush2.bf16.msra.mxu0 %v339
      %389 = vmatprep.subr.bf16.mxu0 0
      %390 = vmatpush2.bf16.msra.mxu0 %v338
      %391 = vmatprep.subr.bf16.mxu0 0
      %392 = vmatpush2.bf16.msra.mxu0 %v337
      %393 = vmatprep.mubr.bf16.mxu0 %v250
      %394 = vmatmul.mubr.bf16.gmra.mxu0 %v249
      %v395 = vpop.f32.mrf.mxu0
      %v396 = vadd.f32 %v223, %v395
      %v397 = vpop.f32.mrf.mxu0
      %v398 = vpop.f32.mrf.mxu0
      %v399 = vadd.f32 %v223, %v398
      %v400 = vpop.f32.mrf.mxu0
      %401 = vmatprep.mubr.bf16.mxu0 %v252
      %402 = vmatmul.mubr.bf16.gmra.mxu0 %v251
      %v403 = vpop.f32.mrf.mxu0
      %v404 = vadd.f32 %v223, %v403
      %v405 = vpop.f32.mrf.mxu0
      %v406 = vpop.f32.mrf.mxu0
      %v407 = vadd.f32 %v223, %v406
      %v408 = vpop.f32.mrf.mxu0
      %409 = vmatprep.mubr.bf16.mxu0 %v254
      %410 = vmatmul.mubr.bf16.gmra.mxu0 %v253
      %v411 = vpop.f32.mrf.mxu0
      %v412 = vadd.f32 %v223, %v411
      %v413 = vpop.f32.mrf.mxu0
      %v414 = vpop.f32.mrf.mxu0
      %v415 = vadd.f32 %v223, %v414
      %v416 = vpop.f32.mrf.mxu0
      %417 = vmatprep.mubr.bf16.mxu0 %v256
      %418 = vmatmul.mubr.bf16.gmra.mxu0 %v255
      %v419 = vpop.f32.mrf.mxu0
      %v420 = vadd.f32 %v223, %v419
      %v421 = vpop.f32.mrf.mxu0
      %v422 = vpop.f32.mrf.mxu0
      %v423 = vadd.f32 %v223, %v422
      %v424 = vpop.f32.mrf.mxu0
      %425 = vdwg.mxu0
      %v426 = vlaneseq
      %v427 = vand.u32 %v426, 127
      %vm428 = vcmp.lt.s32.totalorder %v427, 2
      %v429 = vsel %vm428, %v396, -1e+30
      %v430 = vsel %vm428, %v399, -1e+30
      %v431 = vsel %vm428, %v404, -1e+30
      %v432 = vsel %vm428, %v407, -1e+30
      %v433 = vsel %vm428, %v412, -1e+30
      %v434 = vsel %vm428, %v415, -1e+30
      %v435 = vsel %vm428, %v420, -1e+30
      %v436 = vsel %vm428, %v423, -1e+30
      %437 = vmax.xlane.f32.xlu0 %v429
      %v438 = vpop.xlane.xlu0 %437
      %439 = vmax.xlane.f32.xlu0 %v430
      %v440 = vpop.xlane.xlu0 %439
      %441 = vmax.xlane.f32.xlu0 %v431
      %v442 = vpop.xlane.xlu0 %441
      %443 = vmax.xlane.f32.xlu0 %v432
      %v444 = vpop.xlane.xlu0 %443
      %445 = vmax.xlane.f32.xlu0 %v433
      %v446 = vpop.xlane.xlu0 %445
      %447 = vmax.xlane.f32.xlu0 %v434
      %v448 = vpop.xlane.xlu0 %447
      %449 = vmax.xlane.f32.xlu0 %v435
      %v450 = vpop.xlane.xlu0 %449
      %451 = vmax.xlane.f32.xlu0 %v436
      %v452 = vpop.xlane.xlu0 %451
      %v453 = vsub.f32 %v429, %v438
      %v454 = vsub.f32 %v430, %v440
      %v455 = vsub.f32 %v431, %v442
      %v456 = vsub.f32 %v432, %v444
      %v457 = vsub.f32 %v433, %v446
      %v458 = vsub.f32 %v434, %v448
      %v459 = vsub.f32 %v435, %v450
      %v460 = vsub.f32 %v436, %v452
      %v461 = vmul.f32 %v453, 1.442695
      %v462 = vpow.pop %v461
      %v463 = vmul.f32 %v454, 1.442695
      %v464 = vpow.pop %v463
      %v465 = vmul.f32 %v455, 1.442695
      %v466 = vpow.pop %v465
      %v467 = vmul.f32 %v456, 1.442695
      %v468 = vpow.pop %v467
      %v469 = vmul.f32 %v457, 1.442695
      %v470 = vpow.pop %v469
      %v471 = vmul.f32 %v458, 1.442695
      %v472 = vpow.pop %v471
      %v473 = vmul.f32 %v459, 1.442695
      %v474 = vpow.pop %v473
      %v475 = vmul.f32 %v460, 1.442695
      %v476 = vpow.pop %v475
      %477 = vadd.xlane.f32.xlu0 %v462
      %v478 = vpop.xlane.xlu0 %477
      %479 = vadd.xlane.f32.xlu0 %v464
      %v480 = vpop.xlane.xlu0 %479
      %481 = vadd.xlane.f32.xlu0 %v466
      %v482 = vpop.xlane.xlu0 %481
      %483 = vadd.xlane.f32.xlu0 %v468
      %v484 = vpop.xlane.xlu0 %483
      %485 = vadd.xlane.f32.xlu0 %v470
      %v486 = vpop.xlane.xlu0 %485
      %487 = vadd.xlane.f32.xlu0 %v472
      %v488 = vpop.xlane.xlu0 %487
      %489 = vadd.xlane.f32.xlu0 %v474
      %v490 = vpop.xlane.xlu0 %489
      %491 = vadd.xlane.f32.xlu0 %v476
      %v492 = vpop.xlane.xlu0 %491
      %v493 = vlog2.pop %v478
      %v494 = vmul.f32 %v493, 0.6931472
      %v495 = vlog2.pop %v480
      %v496 = vmul.f32 %v495, 0.6931472
      %v497 = vlog2.pop %v482
      %v498 = vmul.f32 %v497, 0.6931472
      %v499 = vlog2.pop %v484
      %v500 = vmul.f32 %v499, 0.6931472
      %v501 = vlog2.pop %v486
      %v502 = vmul.f32 %v501, 0.6931472
      %v503 = vlog2.pop %v488
      %v504 = vmul.f32 %v503, 0.6931472
      %v505 = vlog2.pop %v490
      %v506 = vmul.f32 %v505, 0.6931472
      %v507 = vlog2.pop %v492
      %v508 = vmul.f32 %v507, 0.6931472
      %v509 = vsub.f32 %v453, %v494
      %v510 = vsub.f32 %v454, %v496
      %v511 = vsub.f32 %v455, %v498
      %v512 = vsub.f32 %v456, %v500
      %v513 = vsub.f32 %v457, %v502
      %v514 = vsub.f32 %v458, %v504
      %v515 = vsub.f32 %v459, %v506
      %v516 = vsub.f32 %v460, %v508
      %517 = vst [vmem:[%s175] sm:$0xff] %v509
      %518 = vst [vmem:[%s175 + $0x8] sm:$0xff] %v510
      %519 = vst [vmem:[%s175 + $0x10] sm:$0xff] %v511
      %520 = vst [vmem:[%s175 + $0x18] sm:$0xff] %v512
      %521 = vst [vmem:[%s175 + $0x20] sm:$0xff] %v513
      %522 = vst [vmem:[%s175 + $0x28] sm:$0xff] %v514
      %523 = vst [vmem:[%s175 + $0x30] sm:$0xff] %v515
      %524 = vst [vmem:[%s175 + $0x38] sm:$0xff] %v516
      %s525 = smul.u32 8, %s14
      %p526 = scmp.lt.s32.totalorder %s525, 31
      %s527 = scalar_select %p526, %s525, 31
      %s528 = smul.addr %s527, 8
      %s529 = scalar_lea.vmem %s3, %s528
      // Predicated region
      $region33: #{gcn_forward.5} parent=31 // pred_check
        %p530 = pneg %p100
      $region34: #{gcn_forward.5} parent=31 // pred_check_branch
        %532 = sbr.rel (%p530) target = $region36
      $region35: #{gcn_forward.5} parent=31 // pred_region
        %s533 = smul.u32 8, %s14
      $region36: #{gcn_forward.5} parent=31 // pred_fallthru
        _
    $region32: #{gcn_forward.5} parent=5 // pred_fallthru
      _
    %p534 = scmp.le.s32.totalorder 2, %s9
    // Predicated region
    $region37: #{gcn_forward.5} parent=5 // pred_check
      %p535 = pneg %p534
    $region38: #{gcn_forward.5} parent=5 // pred_check_branch
      %537 = sbr.rel (%p535) target = $region40
    $region39: #{gcn_forward.5} parent=5 // pred_region
      %s538 = ssub.s32 %s9, 2
      // Predicated region
      $region41: #{gcn_forward.5} parent=39 // pred_check
        %p539 = pneg %p106
      $region42: #{gcn_forward.5} parent=39 // pred_check_branch
        %541 = sbr.rel (%p539) target = $region44
      $region43: #{gcn_forward.5} parent=39 // pred_region
        %s542 = smul.u32 8, %s15
        %p543 = scmp.lt.s32.totalorder %s542, 31
        %s544 = scalar_select %p543, %s542, 31
        %s545 = smul.addr %s544, 8
        %s546 = scalar_lea.vmem %s3, %s545
      $region44: #{gcn_forward.5} parent=39 // pred_fallthru
        _
    $region40: #{gcn_forward.5} parent=5 // pred_fallthru
      _
  $region6: #{gcn_forward.5} parent=0 // loop_footer
    %s13 = sadd.s32 1, %s9
  $region7: #{gcn_forward.5} parent=0 // loop_footer_branch
    %8 = sbr.rel target = $region3
  $region8: #{gcn_forward.5} parent=0 // loop_exit
    _

// kernel: gcn_forward.3
$region0: #{gcn_forward.3}
  #allocation0 [shape = 'u32[]', space=smem, size = 0x4, offset = 0x4, fixed_abs, tag = 'smem constant byte address 0x4 - core index']
  #allocation1 [shape = 'u32[144,128]{1,0:T(1,128)}', space=vmem, size = 0x12000, scoped, tag = 'internal scratch']
  %s0 = inlined_call_operand.vmem [shape: bf16[256,128], index: 0, kind: input, shape index: {}]
  %s1 = inlined_call_operand.vmem [shape: bf16[128,128], index: 1, kind: input, shape index: {}]
  %s2 = inlined_call_operand.vmem [shape: bf16[256,128], index: 2, kind: output, shape index: {}]
  %s3 = sld [smem:[#allocation0]]
  $region41: #{gcn_forward.3} parent=0
    _
  %s5 = ssub.s32 1, %s3
  %s6 = scalar_select 0, %s5, %s3
  loop: start=0, step=1, limit=6
  $region2: #{gcn_forward.3} parent=0 // loop_pre_header
    _
  $region3: #{gcn_forward.3} parent=0 // loop_header
    %s8 = sphi 0, %s12
    %p9 = scmp.ge.s32.totalorder %s8, 6
    %s18 = sphi 0, %s20
    %s21 = sphi 0, %s18
    %s22 = sphi 0, %s21
    %s38 = sphi 0, %s22
    %s42 = sphi 0, %s42
    %s44 = sphi 0, %s42
    %s45 = sphi 0, %s44
    %s59 = sphi 0, %s45
    %s65 = sphi 0, %s67
    %s68 = sphi 0, %s65
    %s69 = sphi 0, %s68
    %s85 = sphi 0, %s69
  $region4: #{gcn_forward.3} parent=0 // loop_header_branch
    %11 = sbr.rel (%p9) target = $region8
  $region5: #{gcn_forward.3} parent=0 // loop_body
    %s13 = ssub.s32 %s8, 1
    %s14 = ssub.s32 %s8, 2
    %s15 = sadd.s32 %s8, 1
    %s16 = ssub.s32 %s8, %s15
    %p17 = scmp.eq.s32.totalorder %s16, 0
    %s19 = sadd.s32 %s18, 1
    %s20 = scalar_select %p17, %s18, %s19
    %p23 = pneg %p17
    %p24 = scmp.eq.s32.totalorder %s8, 3
    %p25 = por %p23, %p24
    %p26 = scmp.ne.s32.totalorder %s18, %s21
    %p27 = scmp.eq.s32.totalorder %s8, 0
    %p28 = por %p26, %p27
    %p29 = scmp.ne.s32.totalorder %s18, %s21
    %p30 = scmp.eq.s32.totalorder %s13, 3
    %p31 = por %p29, %p30
    %p32 = scmp.ne.s32.totalorder %s21, %s22
    %p33 = scmp.eq.s32.totalorder %s13, 0
    %p34 = por %p32, %p33
    %p35 = scmp.ne.s32.totalorder %s21, %s22
    %p36 = scmp.eq.s32.totalorder %s14, 3
    %p37 = por %p35, %p36
    %p39 = scmp.ne.s32.totalorder %s22, %s38
    %p40 = scmp.eq.s32.totalorder %s14, 0
    %p41 = por %p39, %p40
    %s43 = sadd.s32 %s42, 1
    %p46 = scmp.eq.s32.totalorder %s8, 3
    %p47 = scmp.ne.s32.totalorder %s42, %s44
    %p48 = scmp.eq.s32.totalorder %s8, 0
    %p49 = por %p47, %p48
    %p50 = scmp.ne.s32.totalorder %s42, %s44
    %p51 = scmp.eq.s32.totalorder %s13, 3
    %p52 = por %p50, %p51
    %p53 = scmp.ne.s32.totalorder %s44, %s45
    %p54 = scmp.eq.s32.totalorder %s13, 0
    %p55 = por %p53, %p54
    %p56 = scmp.ne.s32.totalorder %s44, %s45
    %p57 = scmp.eq.s32.totalorder %s14, 3
    %p58 = por %p56, %p57
    %p60 = scmp.ne.s32.totalorder %s45, %s59
    %p61 = scmp.eq.s32.totalorder %s14, 0
    %p62 = por %p60, %p61
    %s63 = ssub.s32 %s8, %s15
    %p64 = scmp.eq.s32.totalorder %s63, 0
    %s66 = sadd.s32 %s65, 1
    %s67 = scalar_select %p64, %s65, %s66
    %p70 = pneg %p64
    %p71 = scmp.eq.s32.totalorder %s8, 3
    %p72 = por %p70, %p71
    %p73 = scmp.ne.s32.totalorder %s65, %s68
    %p74 = scmp.eq.s32.totalorder %s8, 0
    %p75 = por %p73, %p74
    %p76 = scmp.ne.s32.totalorder %s65, %s68
    %p77 = scmp.eq.s32.totalorder %s13, 3
    %p78 = por %p76, %p77
    %p79 = scmp.ne.s32.totalorder %s68, %s69
    %p80 = scmp.eq.s32.totalorder %s13, 0
    %p81 = por %p79, %p80
    %p82 = scmp.ne.s32.totalorder %s68, %s69
    %p83 = scmp.eq.s32.totalorder %s14, 3
    %p84 = por %p82, %p83
    %p86 = scmp.ne.s32.totalorder %s69, %s85
    %p87 = scmp.eq.s32.totalorder %s14, 0
    %p88 = por %p86, %p87
    %p89 = scmp.le.s32.totalorder 1, %s8
    %p90 = scmp.lt.s32.totalorder %s8, 5
    %p91 = pnand %p89, %p90
    %p92 = pneg %p91
    // Predicated region
    $region9: #{gcn_forward.3} parent=5 // pred_check
      _
    $region10: #{gcn_forward.3} parent=5 // pred_check_branch
      %94 = sbr.rel (%p91) target = $region12
    $region11: #{gcn_forward.3} parent=5 // pred_region
      %s95 = ssub.s32 %s8, 1
      // Predicated region
      $region13: #{gcn_forward.3} parent=11 // pred_check
        %p96 = pneg %p55
      $region14: #{gcn_forward.3} parent=11 // pred_check_branch
        %98 = sbr.rel (%p96) target = $region16
      $region15: #{gcn_forward.3} parent=11 // pred_region
        _
      $region16: #{gcn_forward.3} parent=11 // pred_fallthru
        _
    $region12: #{gcn_forward.3} parent=5 // pred_fallthru
      _
    %p99 = scmp.lt.s32.totalorder %s8, 4
    // Predicated region
    $region17: #{gcn_forward.3} parent=5 // pred_check
      %p100 = pneg %p99
    $region18: #{gcn_forward.3} parent=5 // pred_check_branch
      %102 = sbr.rel (%p100) target = $region20
    $region19: #{gcn_forward.3} parent=5 // pred_region
      // Predicated region
      $region21: #{gcn_forward.3} parent=19 // pred_check
        %p103 = pneg %p28
      $region22: #{gcn_forward.3} parent=19 // pred_check_branch
        %105 = sbr.rel (%p103) target = $region24
      $region23: #{gcn_forward.3} parent=19 // pred_region
        %s106 = smul.u32 8, %s8
        %p107 = scmp.lt.s32.totalorder %s106, 31
        %s108 = scalar_select %p107, %s106, 31
        %s109 = smul.addr %s108, 4
        %s110 = scalar_lea.vmem %s0, %s109
        %s111 = smul.u32 8, %s8
      $region24: #{gcn_forward.3} parent=19 // pred_fallthru
        _
    $region20: #{gcn_forward.3} parent=5 // pred_fallthru
      _
    %p112 = scmp.le.s32.totalorder 1, %s8
    %p113 = scmp.lt.s32.totalorder %s8, 5
    %p114 = pnand %p112, %p113
    %p115 = pneg %p114
    // Predicated region
    $region25: #{gcn_forward.3} parent=5 // pred_check
      _
    $region26: #{gcn_forward.3} parent=5 // pred_check_branch
      %117 = sbr.rel (%p114) target = $region28
    $region27: #{gcn_forward.3} parent=5 // pred_region
      %s118 = ssub.s32 %s8, 1
      %s119 = smul.u32 8, %s13
      %p120 = scmp.lt.s32.totalorder %s119, 31
      %s121 = scalar_select %p120, %s119, 31
      %s122 = smul.addr %s121, 4
      %s123 = scalar_lea.vmem %s0, %s122
      %p124 = pneg %p34
      %p125 = pneg %p31
      %p126 = pneg %p55
      %p127 = pneg %p52
      %p128 = pneg %p81
      %p129 = pneg %p78
      %s130 = smul.u32 8, %s13
      %p131 = scmp.lt.s32.totalorder %s130, 31
      %s132 = scalar_select %p131, %s130, 31
      %s133 = smul.addr %s132, 4
      %s134 = scalar_lea.vmem %s2, %s133
      %s135 = smul.u32 8, %s13
      %p136 = scmp.lt.s32.totalorder %s135, 31
      %s137 = scalar_select %p136, %s135, 31
      %s138 = smul.addr %s137, 4
      %s139 = scalar_lea.vmem %s0, %s138
      %s140 = smul.u32 8, %s13
      %s141 = smul.u32 8, %s13
      %p142 = scmp.lt.s32.totalorder %s141, 31
      %s143 = scalar_select %p142, %s141, 31
      %s144 = smul.addr %s143, 4
      %s145 = scalar_lea.vmem %s2, %s144
      %s146 = smul.u32 8, %s13
      %v148 = vld [vmem:[%s139] sm:$0xf]
      %v149 = vld [vmem:[%s139 + $0x4] sm:$0xf]
      %v150 = vld [vmem:[%s139 + $0x8] sm:$0xf]
      %v151 = vld [vmem:[%s139 + $0xc] sm:$0xf]
      %v152 = vld [vmem:[%s139 + $0x10] sm:$0xf]
      %v153 = vld [vmem:[%s139 + $0x14] sm:$0xf]
      %v154 = vld [vmem:[%s139 + $0x18] sm:$0xf]
      %v155 = vld [vmem:[%s139 + $0x1c] sm:$0xf]
      %v156 = vld [vmem:[%s1] sm:$0xf]
      %v157 = vld [vmem:[%s1 + $0x4] sm:$0xf]
      %v158 = vld [vmem:[%s1 + $0x8] sm:$0xf]
      %v159 = vld [vmem:[%s1 + $0xc] sm:$0xf]
      %v160 = vld [vmem:[%s1 + $0x10] sm:$0xf]
      %v161 = vld [vmem:[%s1 + $0x14] sm:$0xf]
      %v162 = vld [vmem:[%s1 + $0x18] sm:$0xf]
      %v163 = vld [vmem:[%s1 + $0x1c] sm:$0xf]
      %v164 = vld [vmem:[%s1 + $0x20] sm:$0xf]
      %v165 = vld [vmem:[%s1 + $0x24] sm:$0xf]
      %v166 = vld [vmem:[%s1 + $0x28] sm:$0xf]
      %v167 = vld [vmem:[%s1 + $0x2c] sm:$0xf]
      %v168 = vld [vmem:[%s1 + $0x30] sm:$0xf]
      %v169 = vld [vmem:[%s1 + $0x34] sm:$0xf]
      %v170 = vld [vmem:[%s1 + $0x38] sm:$0xf]
      %v171 = vld [vmem:[%s1 + $0x3c] sm:$0xf]
      %v180 = vunpack.c.l.b16 %v148
      %v181 = vunpack.c.l.b16 %v149
      %v182 = vunpack.c.l.b16 %v150
      %v183 = vunpack.c.l.b16 %v151
      %v184 = vunpack.c.l.b16 %v152
      %v185 = vunpack.c.l.b16 %v153
      %v186 = vunpack.c.l.b16 %v154
      %v187 = vunpack.c.l.b16 %v155
      %v188 = vpack.c.b16 %v181, %v180
      %v189 = vpack.c.b16 %v183, %v182
      %v190 = vpack.c.b16 %v185, %v184
      %v191 = vpack.c.b16 %v187, %v186
      %v212 = vunpack.c.l.b16 %v156
      %v213 = vunpack.c.l.b16 %v157
      %v214 = vunpack.c.l.b16 %v158
      %v215 = vunpack.c.l.b16 %v159
      %v216 = vunpack.c.l.b16 %v160
      %v217 = vunpack.c.l.b16 %v161
      %v218 = vunpack.c.l.b16 %v162
      %v219 = vunpack.c.l.b16 %v163
      %v220 = vunpack.c.l.b16 %v164
      %v221 = vunpack.c.l.b16 %v165
      %v222 = vunpack.c.l.b16 %v166
      %v223 = vunpack.c.l.b16 %v167
      %v224 = vunpack.c.l.b16 %v168
      %v225 = vunpack.c.l.b16 %v169
      %v226 = vunpack.c.l.b16 %v170
      %v227 = vunpack.c.l.b16 %v171
      %v228 = vpack.c.b16 %v213, %v212
      %v229 = vpack.c.b16 %v215, %v214
      %v230 = vpack.c.b16 %v217, %v216
      %v231 = vpack.c.b16 %v219, %v218
      %v232 = vpack.c.b16 %v221, %v220
      %v233 = vpack.c.b16 %v223, %v222
      %v234 = vpack.c.b16 %v225, %v224
      %v235 = vpack.c.b16 %v227, %v226
      %244 = vmatprep.subr.bf16.mxu0 0
      %245 = vmatpush1.bf16.msra.mxu0 %v235
      %246 = vmatprep.subr.bf16.mxu0 0
      %247 = vmatpush1.bf16.msra.mxu0 %v234
      %248 = vmatprep.subr.bf16.mxu0 0
      %249 = vmatpush1.bf16.msra.mxu0 %v233
      %250 = vmatprep.subr.bf16.mxu0 0
      %251 = vmatpush1.bf16.msra.mxu0 %v232
      %252 = vmatprep.subr.bf16.mxu0 0
      %253 = vmatpush1.bf16.msra.mxu0 %v231
      %254 = vmatprep.subr.bf16.mxu0 0
      %255 = vmatpush1.bf16.msra.mxu0 %v230
      %256 = vmatprep.subr.bf16.mxu0 0
      %257 = vmatpush1.bf16.msra.mxu0 %v229
      %258 = vmatprep.subr.bf16.mxu0 0
      %259 = vmatpush1.bf16.msra.mxu0 %v228
      %260 = vmatprep.subr.bf16.mxu0 0
      %261 = vmatpush2.bf16.msra.mxu0 0
      %262 = vmatprep.subr.bf16.mxu0 0
      %263 = vmatpush2.bf16.msra.mxu0 0
      %264 = vmatprep.subr.bf16.mxu0 0
      %265 = vmatpush2.bf16.msra.mxu0 0
      %266 = vmatprep.subr.bf16.mxu0 0
      %267 = vmatpush2.bf16.msra.mxu0 0
      %268 = vmatprep.subr.bf16.mxu0 0
      %269 = vmatpush2.bf16.msra.mxu0 0
      %270 = vmatprep.subr.bf16.mxu0 0
      %271 = vmatpush2.bf16.msra.mxu0 0
      %272 = vmatprep.subr.bf16.mxu0 0
      %273 = vmatpush2.bf16.msra.mxu0 0
      %274 = vmatprep.subr.bf16.mxu0 0
      %275 = vmatpush2.bf16.msra.mxu0 0
      %276 = vmatprep.mubr.bf16.mxu0 0
      %277 = vmatmul.mubr.bf16.gmra.mxu0 %v188
      %v278 = vpop.f32.mrf.mxu0
      %v279 = vadd.f32 0.0, %v278
      %v280 = vpop.f32.mrf.mxu0
      %v281 = vpop.f32.mrf.mxu0
      %v282 = vadd.f32 0.0, %v281
      %v283 = vpop.f32.mrf.mxu0
      %284 = vmatprep.mubr.bf16.mxu0 0
      %285 = vmatmul.mubr.bf16.gmra.mxu0 %v189
      %v286 = vpop.f32.mrf.mxu0
      %v287 = vadd.f32 0.0, %v286
      %v288 = vpop.f32.mrf.mxu0
      %v289 = vpop.f32.mrf.mxu0
      %v290 = vadd.f32 0.0, %v289
      %v291 = vpop.f32.mrf.mxu0
      %292 = vmatprep.mubr.bf16.mxu0 0
      %293 = vmatmul.mubr.bf16.gmra.mxu0 %v190
      %v294 = vpop.f32.mrf.mxu0
      %v295 = vadd.f32 0.0, %v294
      %v296 = vpop.f32.mrf.mxu0
      %v297 = vpop.f32.mrf.mxu0
      %v298 = vadd.f32 0.0, %v297
      %v299 = vpop.f32.mrf.mxu0
      %300 = vmatprep.mubr.bf16.mxu0 0
      %301 = vmatmul.mubr.bf16.gmra.mxu0 %v191
      %v302 = vpop.f32.mrf.mxu0
      %v303 = vadd.f32 0.0, %v302
      %v304 = vpop.f32.mrf.mxu0
      %v305 = vpop.f32.mrf.mxu0
      %v306 = vadd.f32 0.0, %v305
      %v307 = vpop.f32.mrf.mxu0
      %308 = vdwg.mxu0
      %v309 = vpack.c.bf16 %v282, %v279
      %v310 = vpack.c.bf16 %v290, %v287
      %v311 = vpack.c.bf16 %v298, %v295
      %v312 = vpack.c.bf16 %v306, %v303
      %v317 = vunpack.c.l.b16 %v309
      %v318 = vunpack.c.h.b16 %v309
      %v319 = vunpack.c.l.b16 %v310
      %v320 = vunpack.c.h.b16 %v310
      %v321 = vunpack.c.l.b16 %v311
      %v322 = vunpack.c.h.b16 %v311
      %v323 = vunpack.c.l.b16 %v312
      %v324 = vunpack.c.h.b16 %v312
      %v325 = vpack.c.b16 %v317, %v317
      %v326 = vpack.c.b16 %v318, %v318
      %v327 = vpack.c.b16 %v319, %v319
      %v328 = vpack.c.b16 %v320, %v320
      %v329 = vpack.c.b16 %v321, %v321
      %v330 = vpack.c.b16 %v322, %v322
      %v331 = vpack.c.b16 %v323, %v323
      %v332 = vpack.c.b16 %v324, %v324
      %341 = vst [vmem:[%s145] sm:$0xf] %v325
      %342 = vst [vmem:[%s145 + $0x4] sm:$0xf] %v326
      %343 = vst [vmem:[%s145 + $0x8] sm:$0xf] %v327
      %344 = vst [vmem:[%s145 + $0xc] sm:$0xf] %v328
      %345 = vst [vmem:[%s145 + $0x10] sm:$0xf] %v329
      %346 = vst [vmem:[%s145 + $0x14] sm:$0xf] %v330
      %347 = vst [vmem:[%s145 + $0x18] sm:$0xf] %v331
      %348 = vst [vmem:[%s145 + $0x1c] sm:$0xf] %v332
      %s349 = smul.u32 8, %s13
      %p350 = scmp.lt.s32.totalorder %s349, 31
      %s351 = scalar_select %p350, %s349, 31
      %s352 = smul.addr %s351, 4
      %s353 = scalar_lea.vmem %s2, %s352
      // Predicated region
      $region29: #{gcn_forward.3} parent=27 // pred_check
        %p354 = pneg %p78
      $region30: #{gcn_forward.3} parent=27 // pred_check_branch
        %356 = sbr.rel (%p354) target = $region32
      $region31: #{gcn_forward.3} parent=27 // pred_region
        %s357 = smul.u32 8, %s13
      $region32: #{gcn_forward.3} parent=27 // pred_fallthru
        _
    $region28: #{gcn_forward.3} parent=5 // pred_fallthru
      _
    %p358 = scmp.le.s32.totalorder 2, %s8
    // Predicated region
    $region33: #{gcn_forward.3} parent=5 // pred_check
      %p359 = pneg %p358
    $region34: #{gcn_forward.3} parent=5 // pred_check_branch
      %361 = sbr.rel (%p359) target = $region36
    $region35: #{gcn_forward.3} parent=5 // pred_region
      %s362 = ssub.s32 %s8, 2
      // Predicated region
      $region37: #{gcn_forward.3} parent=35 // pred_check
        %p363 = pneg %p84
      $region38: #{gcn_forward.3} parent=35 // pred_check_branch
        %365 = sbr.rel (%p363) target = $region40
      $region39: #{gcn_forward.3} parent=35 // pred_region
        %s366 = smul.u32 8, %s14
        %p367 = scmp.lt.s32.totalorder %s366, 31
        %s368 = scalar_select %p367, %s366, 31
        %s369 = smul.addr %s368, 4
        %s370 = scalar_lea.vmem %s2, %s369
      $region40: #{gcn_forward.3} parent=35 // pred_fallthru
        _
    $region36: #{gcn_forward.3} parent=5 // pred_fallthru
      _
  $region6: #{gcn_forward.3} parent=0 // loop_footer
    %s12 = sadd.s32 1, %s8
  $region7: #{gcn_forward.3} parent=0 // loop_footer_branch
    %7 = sbr.rel target = $region3
  $region8: #{gcn_forward.3} parent=0 // loop_exit
    _

</llo_original>
